<compile_context>
chip_gen: v6e
topology: v6e:2x2x1
jax: 0.10.0
libtpu: 0.0.40
codegen_flags: <defaults>
</compile_context>

<pallas_src>
import jax
import jax.numpy as jnp
import numpy as np
from jax.experimental import pallas as pl
from jax.experimental.pallas import tpu as pltpu

NUM_LAYERS = 12  # total nn.Linear layers in FlightDelayClassifier


def _round_up(v, m):
    return ((v + m - 1) // m) * m


def make_flight_delay_kernel(dims_pad):
    """dims_pad: list of NUM_LAYERS (din_pad, dout_pad) static ints (128-multiples)."""

    def kernel(w_ref, b_ref, x_ref, out_ref):
        # w_ref: (L, P, P) bf16 BN-folded weights (VMEM-resident, single copy)
        # b_ref: (L, 1, P) f32 BN-folded biases
        # x_ref: (TB, Fp) f32 input tile; out_ref: (TB, 128) f32 output tile.

        def layer(i, h, act):
            din, dout = dims_pad[i]
            w = w_ref[i, :din, :dout]                       # bf16, static slice
            y = jnp.dot(h.astype(jnp.bfloat16), w,          # MXU in bf16
                        preferred_element_type=jnp.float32)  # f32 accumulate
            y = y + b_ref[i, :, :dout]                       # f32 VPU math
            return jnp.maximum(y, 0.0) if act else y

        h = x_ref[...]

        # embedding: Linear + BN + ReLU (+ Dropout(0.3) -> identity in eval)
        h = layer(0, h, True)

        # 3x ResidualBlock (layers 1..6)
        for rb in range(3):
            base = 1 + 2 * rb
            idn = h
            o = layer(base, h, True)        # fc1 + bn1 + relu (+ dropout)
            o = layer(base + 1, o, False)   # fc2 + bn2
            h = jnp.maximum(o + idn, 0.0)   # residual add + relu

        # BottleneckResidualBlock (layers 7..9)
        idn = h
        o = layer(7, h, True)               # fc1 + bn1 + relu
        o = layer(8, o, True)               # fc2 + bn2 + relu (+ dropout)
        o = layer(9, o, False)              # fc3 + bn3
        h = jnp.maximum(o + idn, 0.0)

        # prediction head: Linear(H,64)+BN+ReLU (+dropout), Linear(64,1)+Sigmoid
        o = layer(10, h, True)
        o = layer(11, o, False)             # last layer has no BN (identity fold)
        out_ref[...] = jax.nn.sigmoid(o)    # lane-dense (TB,128) store; col 0 = result

    return kernel


def _build_slabs(params, P):
    """Fold BN into the linears; pack into zero-padded bf16/f32 slabs."""
    L = len(params)
    w_np = np.zeros((L, P, P), np.float32)
    b_np = np.zeros((L, 1, P), np.float32)
    for i, (wt, b, s, t) in enumerate(params):
        din, dout = wt.shape
        w_np[i, :din, :dout] = np.asarray(wt * s)          # (din,dout)*(1,dout)
        b_np[i, :, :dout] = np.asarray(b * s + t)          # (1,dout)
    return jnp.asarray(w_np, jnp.bfloat16), jnp.asarray(b_np, jnp.float32)


def flight_delay_forward(x, params, tb=512):
    """params: list of NUM_LAYERS tuples (W_t(in,out), b(1,out), s(1,out), t(1,out))."""
    B, F = x.shape
    L = len(params)
    assert L == NUM_LAYERS

    # Per-layer padded (din, dout), each rounded up to a 128 lane multiple.
    dims_pad = [(_round_up(wt.shape[0], 128), _round_up(wt.shape[1], 128))
                for wt, _, _, _ in params]
    Fp = _round_up(F, 128)
    dims_pad[0] = (Fp, dims_pad[0][1])
    OUT_P = dims_pad[-1][1]                       # 128 (last layer dout=1)
    P = max(Fp, max(max(d) for d in dims_pad))    # slab width, 128 multiple

    # Batch tile: large, 8-aligned; ensure >=2 grid steps when possible so both
    # v7x TensorCores get work (no-op on single-TC v5e/v6e).
    TB = _round_up(min(tb, _round_up(B, 8)), 8)
    if B >= 16 and pl.cdiv(_round_up(B, 8), TB) < 2:
        TB = max(8, _round_up(pl.cdiv(B, 2), 8))

    # Minimal host-side pad: feature dim to 128, batch to a multiple of 8 only.
    B8 = _round_up(B, 8)
    xp = jnp.pad(x.astype(jnp.float32), ((0, B8 - B), (0, Fp - F)))

    w_slab, b_slab = _build_slabs(params, P)

    # Explicit scoped-VMEM budget: resident slabs + pipelined in/out tiles +
    # live intermediates, with margin; headroom kept under v7x's 64 MiB.
    slab_bytes = L * P * P * 2 + L * P * 4
    act_bytes = 2 * TB * Fp * 4 + 2 * TB * OUT_P * 4 + 12 * TB * P * 4
    vmem_limit = int(min(max(2 * (slab_bytes + act_bytes) + (4 << 20), 32 << 20),
                         56 << 20))

    grid = (pl.cdiv(B8, TB),)
    kernel = make_flight_delay_kernel(dims_pad)
    out = pl.pallas_call(
        kernel,
        out_shape=jax.ShapeDtypeStruct((B8, OUT_P), jnp.float32),
        grid=grid,
        in_specs=[
            # Whole-array, single-copy VMEM residents (no double-buffering).
            pl.BlockSpec(memory_space=pltpu.MemorySpace.VMEM),   # weight slab
            pl.BlockSpec(memory_space=pltpu.MemorySpace.VMEM),   # bias slab
            pl.BlockSpec((TB, Fp), lambda i: (i, 0)),            # activation tile
        ],
        out_specs=pl.BlockSpec((TB, OUT_P), lambda i: (i, 0)),
        compiler_params=pltpu.CompilerParams(
            dimension_semantics=("parallel",),
            vmem_limit_bytes=vmem_limit),
    )(w_slab, b_slab, xp)
    return out[:B, :1]


def init_params(key, input_dim, hidden_dim):
    """Deterministic synthetic parameters mirroring the PyTorch module's shapes."""
    hb = hidden_dim // 2
    layer_dims = [
        (input_dim, hidden_dim, True),    # embedding Linear
        (hidden_dim, hidden_dim, True),   # res_block1 fc1
        (hidden_dim, hidden_dim, True),   # res_block1 fc2
        (hidden_dim, hidden_dim, True),   # res_block2 fc1
        (hidden_dim, hidden_dim, True),   # res_block2 fc2
        (hidden_dim, hidden_dim, True),   # res_block3 fc1
        (hidden_dim, hidden_dim, True),   # res_block3 fc2
        (hidden_dim, hb, True),           # bottleneck fc1
        (hb, hb, True),                   # bottleneck fc2
        (hb, hidden_dim, True),           # bottleneck fc3
        (hidden_dim, 64, True),           # prediction Linear(H, 64)
        (64, 1, False),                   # prediction Linear(64, 1) (no BN)
    ]
    assert len(layer_dims) == NUM_LAYERS
    eps = 1e-5
    params = []
    for din, dout, has_bn in layer_dims:
        key, k1, k2, k3, k4, k5, k6 = jax.random.split(key, 7)
        bound = 1.0 / np.sqrt(din)
        w = jax.random.uniform(k1, (dout, din), minval=-bound, maxval=bound)
        b = jax.random.uniform(k2, (dout,), minval=-bound, maxval=bound)
        if has_bn:
            gamma = 1.0 + 0.1 * jax.random.normal(k3, (dout,))
            beta = 0.1 * jax.random.normal(k4, (dout,))
            rmean = 0.1 * jax.random.normal(k5, (dout,))
            rvar = jnp.abs(1.0 + 0.1 * jax.random.normal(k6, (dout,)))
            s = gamma / jnp.sqrt(rvar + eps)
            t = beta - rmean * s
        else:
            s = jnp.ones((dout,))
            t = jnp.zeros((dout,))
        params.append((
            jnp.asarray(w.T, jnp.float32),                # (in, out)
            jnp.asarray(b, jnp.float32).reshape(1, dout),
            jnp.asarray(s, jnp.float32).reshape(1, dout),
            jnp.asarray(t, jnp.float32).reshape(1, dout),
        ))
    return params


def reference_forward(x, params):
    """Pure-JAX f32 reference mirroring the PyTorch eval-mode forward (unfolded BN)."""
    def lin(h, i, act):
        wt, b, s, t = params[i]
        y = (h @ wt + b) * s + t
        return jnp.maximum(y, 0.0) if act else y

    h = lin(x, 0, True)
    for rb in range(3):
        base = 1 + 2 * rb
        idn = h
        o = lin(h, base, True)
        o = lin(o, base + 1, False)
        h = jnp.maximum(o + idn, 0.0)
    idn = h
    o = lin(h, 7, True)
    o = lin(o, 8, True)
    o = lin(o, 9, False)
    h = jnp.maximum(o + idn, 0.0)
    o = lin(h, 10, True)
    o = lin(o, 11, False)
    return jax.nn.sigmoid(o)


if __name__ == "__main__":
    key = jax.random.PRNGKey(0)
    batch, input_dim, hidden_dim = 8, 16, 32
    kx, kp = jax.random.split(key)
    x = jax.random.normal(kx, (batch, input_dim), dtype=jnp.float32)
    params = init_params(kp, input_dim, hidden_dim)

    out = flight_delay_forward(x, params)
    out = jax.block_until_ready(out)

    ref = reference_forward(x, params)
    assert out.shape == (batch, 1)
    # bf16 matmul weights -> looser tolerance vs the f32 reference.
    np.testing.assert_allclose(np.asarray(out), np.asarray(ref),
                               rtol=2e-2, atol=2e-2)
    print("KERNEL_OK")
</pallas_src>

<mosaic_0001>
module attributes {stable_mosaic.version = 11 : i64} {
  func.func @kernel(%arg0: i32, %arg1: memref<12x128x128xbf16, #tpu.memory_space<vmem>>, %arg2: memref<12x1x128xf32, #tpu.memory_space<vmem>>, %arg3: memref<8x128xf32, #tpu.memory_space<vmem>>, %arg4: memref<8x128xf32, #tpu.memory_space<vmem>>) attributes {dimension_semantics = [#tpu.dimension_semantics<parallel>], iteration_bounds = array<i64: 1>, scalar_prefetch = 0 : i64, scratch_operands = 0 : i64, tpu.core_type = #tpu.core_type<tc>, window_params = [{pipeline_mode = #tpu.pipeline_mode<synchronous>, transform_indices = @transform_0, window_bounds = array<i64: 12, 128, 128>}, {pipeline_mode = #tpu.pipeline_mode<synchronous>, transform_indices = @transform_1, window_bounds = array<i64: 12, 1, 128>}, {transform_indices = @transform_2, window_bounds = array<i64: 8, 128>}, {transform_indices = @transform_3, window_bounds = array<i64: 8, 128>}]} {
    %c0 = arith.constant 0 : index
    %c0_0 = arith.constant 0 : index
    %0 = vector.load %arg3[%c0, %c0_0] : memref<8x128xf32, #tpu.memory_space<vmem>>, vector<8x128xf32>
    %c0_1 = arith.constant 0 : index
    %c0_2 = arith.constant 0 : index
    %c0_3 = arith.constant 0 : index
    %1 = vector.load %arg1[%c0_1, %c0_2, %c0_3] : memref<12x128x128xbf16, #tpu.memory_space<vmem>>, vector<1x128x128xbf16>
    %2 = vector.shape_cast %1 : vector<1x128x128xbf16> to vector<128x128xbf16>
    %3 = arith.truncf %0 : vector<8x128xf32> to vector<8x128xbf16>
    %cst = arith.constant dense<0.000000e+00> : vector<8x128xf32>
    %4 = tpu.matmul %3, %2, %cst {dimension_numbers = #tpu.dot_dimension_numbers<[1], [0], [0], [1], [0, 0, 1, 1], [], []>} : vector<8x128xbf16>, vector<128x128xbf16>, vector<8x128xf32> -> vector<8x128xf32>
    %c0_4 = arith.constant 0 : index
    %c0_5 = arith.constant 0 : index
    %c0_6 = arith.constant 0 : index
    %5 = vector.load %arg2[%c0_4, %c0_5, %c0_6] : memref<12x1x128xf32, #tpu.memory_space<vmem>>, vector<1x1x128xf32>
    %6 = vector.shape_cast %5 : vector<1x1x128xf32> to vector<1x128xf32>
    %7 = vector.broadcast %6 : vector<1x128xf32> to vector<8x128xf32>
    %8 = arith.addf %4, %7 : vector<8x128xf32>
    %cst_7 = arith.constant 0.000000e+00 : f32
    %9 = vector.broadcast %cst_7 : f32 to vector<8x128xf32>
    %10 = arith.maximumf %8, %9 : vector<8x128xf32>
    %c1 = arith.constant 1 : index
    %c0_8 = arith.constant 0 : index
    %c0_9 = arith.constant 0 : index
    %11 = vector.load %arg1[%c1, %c0_8, %c0_9] : memref<12x128x128xbf16, #tpu.memory_space<vmem>>, vector<1x128x128xbf16>
    %12 = vector.shape_cast %11 : vector<1x128x128xbf16> to vector<128x128xbf16>
    %13 = arith.truncf %10 : vector<8x128xf32> to vector<8x128xbf16>
    %cst_10 = arith.constant dense<0.000000e+00> : vector<8x128xf32>
    %14 = tpu.matmul %13, %12, %cst_10 {dimension_numbers = #tpu.dot_dimension_numbers<[1], [0], [0], [1], [0, 0, 1, 1], [], []>} : vector<8x128xbf16>, vector<128x128xbf16>, vector<8x128xf32> -> vector<8x128xf32>
    %c1_11 = arith.constant 1 : index
    %c0_12 = arith.constant 0 : index
    %c0_13 = arith.constant 0 : index
    %15 = vector.load %arg2[%c1_11, %c0_12, %c0_13] : memref<12x1x128xf32, #tpu.memory_space<vmem>>, vector<1x1x128xf32>
    %16 = vector.shape_cast %15 : vector<1x1x128xf32> to vector<1x128xf32>
    %17 = vector.broadcast %16 : vector<1x128xf32> to vector<8x128xf32>
    %18 = arith.addf %14, %17 : vector<8x128xf32>
    %cst_14 = arith.constant 0.000000e+00 : f32
    %19 = vector.broadcast %cst_14 : f32 to vector<8x128xf32>
    %20 = arith.maximumf %18, %19 : vector<8x128xf32>
    %c2 = arith.constant 2 : index
    %c0_15 = arith.constant 0 : index
    %c0_16 = arith.constant 0 : index
    %21 = vector.load %arg1[%c2, %c0_15, %c0_16] : memref<12x128x128xbf16, #tpu.memory_space<vmem>>, vector<1x128x128xbf16>
    %22 = vector.shape_cast %21 : vector<1x128x128xbf16> to vector<128x128xbf16>
    %23 = arith.truncf %20 : vector<8x128xf32> to vector<8x128xbf16>
    %cst_17 = arith.constant dense<0.000000e+00> : vector<8x128xf32>
    %24 = tpu.matmul %23, %22, %cst_17 {dimension_numbers = #tpu.dot_dimension_numbers<[1], [0], [0], [1], [0, 0, 1, 1], [], []>} : vector<8x128xbf16>, vector<128x128xbf16>, vector<8x128xf32> -> vector<8x128xf32>
    %c2_18 = arith.constant 2 : index
    %c0_19 = arith.constant 0 : index
    %c0_20 = arith.constant 0 : index
    %25 = vector.load %arg2[%c2_18, %c0_19, %c0_20] : memref<12x1x128xf32, #tpu.memory_space<vmem>>, vector<1x1x128xf32>
    %26 = vector.shape_cast %25 : vector<1x1x128xf32> to vector<1x128xf32>
    %27 = vector.broadcast %26 : vector<1x128xf32> to vector<8x128xf32>
    %28 = arith.addf %24, %27 : vector<8x128xf32>
    %29 = arith.addf %28, %10 : vector<8x128xf32>
    %cst_21 = arith.constant 0.000000e+00 : f32
    %30 = vector.broadcast %cst_21 : f32 to vector<8x128xf32>
    %31 = arith.maximumf %29, %30 : vector<8x128xf32>
    %c3 = arith.constant 3 : index
    %c0_22 = arith.constant 0 : index
    %c0_23 = arith.constant 0 : index
    %32 = vector.load %arg1[%c3, %c0_22, %c0_23] : memref<12x128x128xbf16, #tpu.memory_space<vmem>>, vector<1x128x128xbf16>
    %33 = vector.shape_cast %32 : vector<1x128x128xbf16> to vector<128x128xbf16>
    %34 = arith.truncf %31 : vector<8x128xf32> to vector<8x128xbf16>
    %cst_24 = arith.constant dense<0.000000e+00> : vector<8x128xf32>
    %35 = tpu.matmul %34, %33, %cst_24 {dimension_numbers = #tpu.dot_dimension_numbers<[1], [0], [0], [1], [0, 0, 1, 1], [], []>} : vector<8x128xbf16>, vector<128x128xbf16>, vector<8x128xf32> -> vector<8x128xf32>
    %c3_25 = arith.constant 3 : index
    %c0_26 = arith.constant 0 : index
    %c0_27 = arith.constant 0 : index
    %36 = vector.load %arg2[%c3_25, %c0_26, %c0_27] : memref<12x1x128xf32, #tpu.memory_space<vmem>>, vector<1x1x128xf32>
    %37 = vector.shape_cast %36 : vector<1x1x128xf32> to vector<1x128xf32>
    %38 = vector.broadcast %37 : vector<1x128xf32> to vector<8x128xf32>
    %39 = arith.addf %35, %38 : vector<8x128xf32>
    %cst_28 = arith.constant 0.000000e+00 : f32
    %40 = vector.broadcast %cst_28 : f32 to vector<8x128xf32>
    %41 = arith.maximumf %39, %40 : vector<8x128xf32>
    %c4 = arith.constant 4 : index
    %c0_29 = arith.constant 0 : index
    %c0_30 = arith.constant 0 : index
    %42 = vector.load %arg1[%c4, %c0_29, %c0_30] : memref<12x128x128xbf16, #tpu.memory_space<vmem>>, vector<1x128x128xbf16>
    %43 = vector.shape_cast %42 : vector<1x128x128xbf16> to vector<128x128xbf16>
    %44 = arith.truncf %41 : vector<8x128xf32> to vector<8x128xbf16>
    %cst_31 = arith.constant dense<0.000000e+00> : vector<8x128xf32>
    %45 = tpu.matmul %44, %43, %cst_31 {dimension_numbers = #tpu.dot_dimension_numbers<[1], [0], [0], [1], [0, 0, 1, 1], [], []>} : vector<8x128xbf16>, vector<128x128xbf16>, vector<8x128xf32> -> vector<8x128xf32>
    %c4_32 = arith.constant 4 : index
    %c0_33 = arith.constant 0 : index
    %c0_34 = arith.constant 0 : index
    %46 = vector.load %arg2[%c4_32, %c0_33, %c0_34] : memref<12x1x128xf32, #tpu.memory_space<vmem>>, vector<1x1x128xf32>
    %47 = vector.shape_cast %46 : vector<1x1x128xf32> to vector<1x128xf32>
    %48 = vector.broadcast %47 : vector<1x128xf32> to vector<8x128xf32>
    %49 = arith.addf %45, %48 : vector<8x128xf32>
    %50 = arith.addf %49, %31 : vector<8x128xf32>
    %cst_35 = arith.constant 0.000000e+00 : f32
    %51 = vector.broadcast %cst_35 : f32 to vector<8x128xf32>
    %52 = arith.maximumf %50, %51 : vector<8x128xf32>
    %c5 = arith.constant 5 : index
    %c0_36 = arith.constant 0 : index
    %c0_37 = arith.constant 0 : index
    %53 = vector.load %arg1[%c5, %c0_36, %c0_37] : memref<12x128x128xbf16, #tpu.memory_space<vmem>>, vector<1x128x128xbf16>
    %54 = vector.shape_cast %53 : vector<1x128x128xbf16> to vector<128x128xbf16>
    %55 = arith.truncf %52 : vector<8x128xf32> to vector<8x128xbf16>
    %cst_38 = arith.constant dense<0.000000e+00> : vector<8x128xf32>
    %56 = tpu.matmul %55, %54, %cst_38 {dimension_numbers = #tpu.dot_dimension_numbers<[1], [0], [0], [1], [0, 0, 1, 1], [], []>} : vector<8x128xbf16>, vector<128x128xbf16>, vector<8x128xf32> -> vector<8x128xf32>
    %c5_39 = arith.constant 5 : index
    %c0_40 = arith.constant 0 : index
    %c0_41 = arith.constant 0 : index
    %57 = vector.load %arg2[%c5_39, %c0_40, %c0_41] : memref<12x1x128xf32, #tpu.memory_space<vmem>>, vector<1x1x128xf32>
    %58 = vector.shape_cast %57 : vector<1x1x128xf32> to vector<1x128xf32>
    %59 = vector.broadcast %58 : vector<1x128xf32> to vector<8x128xf32>
    %60 = arith.addf %56, %59 : vector<8x128xf32>
    %cst_42 = arith.constant 0.000000e+00 : f32
    %61 = vector.broadcast %cst_42 : f32 to vector<8x128xf32>
    %62 = arith.maximumf %60, %61 : vector<8x128xf32>
    %c6 = arith.constant 6 : index
    %c0_43 = arith.constant 0 : index
    %c0_44 = arith.constant 0 : index
    %63 = vector.load %arg1[%c6, %c0_43, %c0_44] : memref<12x128x128xbf16, #tpu.memory_space<vmem>>, vector<1x128x128xbf16>
    %64 = vector.shape_cast %63 : vector<1x128x128xbf16> to vector<128x128xbf16>
    %65 = arith.truncf %62 : vector<8x128xf32> to vector<8x128xbf16>
    %cst_45 = arith.constant dense<0.000000e+00> : vector<8x128xf32>
    %66 = tpu.matmul %65, %64, %cst_45 {dimension_numbers = #tpu.dot_dimension_numbers<[1], [0], [0], [1], [0, 0, 1, 1], [], []>} : vector<8x128xbf16>, vector<128x128xbf16>, vector<8x128xf32> -> vector<8x128xf32>
    %c6_46 = arith.constant 6 : index
    %c0_47 = arith.constant 0 : index
    %c0_48 = arith.constant 0 : index
    %67 = vector.load %arg2[%c6_46, %c0_47, %c0_48] : memref<12x1x128xf32, #tpu.memory_space<vmem>>, vector<1x1x128xf32>
    %68 = vector.shape_cast %67 : vector<1x1x128xf32> to vector<1x128xf32>
    %69 = vector.broadcast %68 : vector<1x128xf32> to vector<8x128xf32>
    %70 = arith.addf %66, %69 : vector<8x128xf32>
    %71 = arith.addf %70, %52 : vector<8x128xf32>
    %cst_49 = arith.constant 0.000000e+00 : f32
    %72 = vector.broadcast %cst_49 : f32 to vector<8x128xf32>
    %73 = arith.maximumf %71, %72 : vector<8x128xf32>
    %c7 = arith.constant 7 : index
    %c0_50 = arith.constant 0 : index
    %c0_51 = arith.constant 0 : index
    %74 = vector.load %arg1[%c7, %c0_50, %c0_51] : memref<12x128x128xbf16, #tpu.memory_space<vmem>>, vector<1x128x128xbf16>
    %75 = vector.shape_cast %74 : vector<1x128x128xbf16> to vector<128x128xbf16>
    %76 = arith.truncf %73 : vector<8x128xf32> to vector<8x128xbf16>
    %cst_52 = arith.constant dense<0.000000e+00> : vector<8x128xf32>
    %77 = tpu.matmul %76, %75, %cst_52 {dimension_numbers = #tpu.dot_dimension_numbers<[1], [0], [0], [1], [0, 0, 1, 1], [], []>} : vector<8x128xbf16>, vector<128x128xbf16>, vector<8x128xf32> -> vector<8x128xf32>
    %c7_53 = arith.constant 7 : index
    %c0_54 = arith.constant 0 : index
    %c0_55 = arith.constant 0 : index
    %78 = vector.load %arg2[%c7_53, %c0_54, %c0_55] : memref<12x1x128xf32, #tpu.memory_space<vmem>>, vector<1x1x128xf32>
    %79 = vector.shape_cast %78 : vector<1x1x128xf32> to vector<1x128xf32>
    %80 = vector.broadcast %79 : vector<1x128xf32> to vector<8x128xf32>
    %81 = arith.addf %77, %80 : vector<8x128xf32>
    %cst_56 = arith.constant 0.000000e+00 : f32
    %82 = vector.broadcast %cst_56 : f32 to vector<8x128xf32>
    %83 = arith.maximumf %81, %82 : vector<8x128xf32>
    %c8 = arith.constant 8 : index
    %c0_57 = arith.constant 0 : index
    %c0_58 = arith.constant 0 : index
    %84 = vector.load %arg1[%c8, %c0_57, %c0_58] : memref<12x128x128xbf16, #tpu.memory_space<vmem>>, vector<1x128x128xbf16>
    %85 = vector.shape_cast %84 : vector<1x128x128xbf16> to vector<128x128xbf16>
    %86 = arith.truncf %83 : vector<8x128xf32> to vector<8x128xbf16>
    %cst_59 = arith.constant dense<0.000000e+00> : vector<8x128xf32>
    %87 = tpu.matmul %86, %85, %cst_59 {dimension_numbers = #tpu.dot_dimension_numbers<[1], [0], [0], [1], [0, 0, 1, 1], [], []>} : vector<8x128xbf16>, vector<128x128xbf16>, vector<8x128xf32> -> vector<8x128xf32>
    %c8_60 = arith.constant 8 : index
    %c0_61 = arith.constant 0 : index
    %c0_62 = arith.constant 0 : index
    %88 = vector.load %arg2[%c8_60, %c0_61, %c0_62] : memref<12x1x128xf32, #tpu.memory_space<vmem>>, vector<1x1x128xf32>
    %89 = vector.shape_cast %88 : vector<1x1x128xf32> to vector<1x128xf32>
    %90 = vector.broadcast %89 : vector<1x128xf32> to vector<8x128xf32>
    %91 = arith.addf %87, %90 : vector<8x128xf32>
    %cst_63 = arith.constant 0.000000e+00 : f32
    %92 = vector.broadcast %cst_63 : f32 to vector<8x128xf32>
    %93 = arith.maximumf %91, %92 : vector<8x128xf32>
    %c9 = arith.constant 9 : index
    %c0_64 = arith.constant 0 : index
    %c0_65 = arith.constant 0 : index
    %94 = vector.load %arg1[%c9, %c0_64, %c0_65] : memref<12x128x128xbf16, #tpu.memory_space<vmem>>, vector<1x128x128xbf16>
    %95 = vector.shape_cast %94 : vector<1x128x128xbf16> to vector<128x128xbf16>
    %96 = arith.truncf %93 : vector<8x128xf32> to vector<8x128xbf16>
    %cst_66 = arith.constant dense<0.000000e+00> : vector<8x128xf32>
    %97 = tpu.matmul %96, %95, %cst_66 {dimension_numbers = #tpu.dot_dimension_numbers<[1], [0], [0], [1], [0, 0, 1, 1], [], []>} : vector<8x128xbf16>, vector<128x128xbf16>, vector<8x128xf32> -> vector<8x128xf32>
    %c9_67 = arith.constant 9 : index
    %c0_68 = arith.constant 0 : index
    %c0_69 = arith.constant 0 : index
    %98 = vector.load %arg2[%c9_67, %c0_68, %c0_69] : memref<12x1x128xf32, #tpu.memory_space<vmem>>, vector<1x1x128xf32>
    %99 = vector.shape_cast %98 : vector<1x1x128xf32> to vector<1x128xf32>
    %100 = vector.broadcast %99 : vector<1x128xf32> to vector<8x128xf32>
    %101 = arith.addf %97, %100 : vector<8x128xf32>
    %102 = arith.addf %101, %73 : vector<8x128xf32>
    %cst_70 = arith.constant 0.000000e+00 : f32
    %103 = vector.broadcast %cst_70 : f32 to vector<8x128xf32>
    %104 = arith.maximumf %102, %103 : vector<8x128xf32>
    %c10 = arith.constant 10 : index
    %c0_71 = arith.constant 0 : index
    %c0_72 = arith.constant 0 : index
    %105 = vector.load %arg1[%c10, %c0_71, %c0_72] : memref<12x128x128xbf16, #tpu.memory_space<vmem>>, vector<1x128x128xbf16>
    %106 = vector.shape_cast %105 : vector<1x128x128xbf16> to vector<128x128xbf16>
    %107 = arith.truncf %104 : vector<8x128xf32> to vector<8x128xbf16>
    %cst_73 = arith.constant dense<0.000000e+00> : vector<8x128xf32>
    %108 = tpu.matmul %107, %106, %cst_73 {dimension_numbers = #tpu.dot_dimension_numbers<[1], [0], [0], [1], [0, 0, 1, 1], [], []>} : vector<8x128xbf16>, vector<128x128xbf16>, vector<8x128xf32> -> vector<8x128xf32>
    %c10_74 = arith.constant 10 : index
    %c0_75 = arith.constant 0 : index
    %c0_76 = arith.constant 0 : index
    %109 = vector.load %arg2[%c10_74, %c0_75, %c0_76] : memref<12x1x128xf32, #tpu.memory_space<vmem>>, vector<1x1x128xf32>
    %110 = vector.shape_cast %109 : vector<1x1x128xf32> to vector<1x128xf32>
    %111 = vector.broadcast %110 : vector<1x128xf32> to vector<8x128xf32>
    %112 = arith.addf %108, %111 : vector<8x128xf32>
    %cst_77 = arith.constant 0.000000e+00 : f32
    %113 = vector.broadcast %cst_77 : f32 to vector<8x128xf32>
    %114 = arith.maximumf %112, %113 : vector<8x128xf32>
    %c11 = arith.constant 11 : index
    %c0_78 = arith.constant 0 : index
    %c0_79 = arith.constant 0 : index
    %115 = vector.load %arg1[%c11, %c0_78, %c0_79] : memref<12x128x128xbf16, #tpu.memory_space<vmem>>, vector<1x128x128xbf16>
    %116 = vector.shape_cast %115 : vector<1x128x128xbf16> to vector<128x128xbf16>
    %117 = arith.truncf %114 : vector<8x128xf32> to vector<8x128xbf16>
    %cst_80 = arith.constant dense<0.000000e+00> : vector<8x128xf32>
    %118 = tpu.matmul %117, %116, %cst_80 {dimension_numbers = #tpu.dot_dimension_numbers<[1], [0], [0], [1], [0, 0, 1, 1], [], []>} : vector<8x128xbf16>, vector<128x128xbf16>, vector<8x128xf32> -> vector<8x128xf32>
    %c11_81 = arith.constant 11 : index
    %c0_82 = arith.constant 0 : index
    %c0_83 = arith.constant 0 : index
    %119 = vector.load %arg2[%c11_81, %c0_82, %c0_83] : memref<12x1x128xf32, #tpu.memory_space<vmem>>, vector<1x1x128xf32>
    %120 = vector.shape_cast %119 : vector<1x1x128xf32> to vector<1x128xf32>
    %121 = vector.broadcast %120 : vector<1x128xf32> to vector<8x128xf32>
    %122 = arith.addf %118, %121 : vector<8x128xf32>
    %123 = arith.negf %122 : vector<8x128xf32>
    %124 = math.exp %123 : vector<8x128xf32>
    %cst_84 = arith.constant 1.000000e+00 : f32
    %125 = vector.broadcast %cst_84 : f32 to vector<8x128xf32>
    %126 = arith.addf %125, %124 : vector<8x128xf32>
    %127 = arith.divf %125, %126 : vector<8x128xf32>
    %c0_85 = arith.constant 0 : index
    %c0_86 = arith.constant 0 : index
    %128 = vector.load %arg4[%c0_85, %c0_86] : memref<8x128xf32, #tpu.memory_space<vmem>>, vector<8x128xf32>
    tpu.vector_store %arg4[%c0_85, %c0_86], %127 {strides = array<i32>} : memref<8x128xf32, #tpu.memory_space<vmem>>, vector<8x128xf32>,
    return
  }
  func.func @transform_0(%arg0: i32) -> (i32, i32, i32) {
    %c0_i32 = arith.constant 0 : i32
    %c0_i32_0 = arith.constant 0 : i32
    %c0_i32_1 = arith.constant 0 : i32
    %c0_i32_2 = arith.constant 0 : i32
    return %c0_i32, %c0_i32_0, %c0_i32_1 : i32, i32, i32
  }
  func.func @transform_1(%arg0: i32) -> (i32, i32, i32) {
    %c0_i32 = arith.constant 0 : i32
    %c0_i32_0 = arith.constant 0 : i32
    %c0_i32_1 = arith.constant 0 : i32
    %c0_i32_2 = arith.constant 0 : i32
    return %c0_i32, %c0_i32_0, %c0_i32_1 : i32, i32, i32
  }
  func.func @transform_2(%arg0: i32) -> (i32, i32) {
    %c0_i32 = arith.constant 0 : i32
    %c0_i32_0 = arith.constant 0 : i32
    return %arg0, %c0_i32 : i32, i32
  }
  func.func @transform_3(%arg0: i32) -> (i32, i32) {
    %c0_i32 = arith.constant 0 : i32
    %c0_i32_0 = arith.constant 0 : i32
    return %arg0, %c0_i32 : i32, i32
  }
}

</mosaic_0001>

<llo_original>
// kernel: tpu_custom_call.1
$region0: #{tpu_custom_call.1}
  #allocation0 [shape = 'u32[]', space=smem, size = 0x4, offset = 0x4, fixed_abs, tag = 'smem constant byte address 0x4 - core index']
  #allocation1 [shape = 'u32[144,128]{1,0:T(1,128)}', space=vmem, size = 0x12000, scoped, tag = 'internal scratch']
  %s0 = inlined_call_operand.hbm [shape: bf16[12,128,128], index: 0, kind: input, shape index: {}]
  %s1 = inlined_call_operand.hbm [shape: f32[12,1,128], index: 1, kind: input, shape index: {}]
  %s2 = inlined_call_operand.hbm [shape: f32[8,128], index: 2, kind: input, shape index: {}]
  %s3 = inlined_call_operand.hbm [shape: f32[8,128], index: 3, kind: output, shape index: {}]
  %s4 = sld [smem:[#allocation0]]
  $region34: #{tpu_custom_call.1} parent=0
    _
  %s6 = ssub.s32 1, %s4
  %s7 = scalar_select 0, %s6, %s4
  $region1: #{tpu_custom_call.1} parent=0
    #allocation2 [shape = 'u8[393216]{0}', space=vmem, size = 0x60000, scoped, tag = 'input window, operand 0, single buffered']
    #allocation3 [shape = 's32[1]{0}', space=sflag, size = 0x4, scoped, tag = 'scoped memory for tpu_custom_call.1']
    #allocation4 [shape = 's32[1]{0}', space=sflag, size = 0x4, scoped, tag = 'scoped memory for tpu_custom_call.1']
    #allocation5 [shape = 'u8[6144]{0}', space=vmem, size = 0x1800, scoped, tag = 'input window, operand 1, single buffered']
    #allocation6 [shape = 's32[1]{0}', space=sflag, size = 0x4, scoped, tag = 'scoped memory for tpu_custom_call.1']
    #allocation7 [shape = 'u8[4096]{0}', space=vmem, size = 0x1000, scoped, tag = 'input window, operand 2, single buffered']
    #allocation8 [shape = 'u8[4096]{0}', space=vmem, size = 0x1000, scoped, tag = 'output window, operand 0, single buffered']
    %8 = vsyncpa [#allocation3], 0
    %9 = vsyncpa [#allocation6], 0
    %10 = vsyncpa [#allocation4], 0
    // Predicated region
    $region2: #{tpu_custom_call.1} parent=1 // pred_check
      _
    $region3: #{tpu_custom_call.1} parent=1 // pred_check_branch
      %12 = sbr.rel (0) target = $region5
    $region4: #{tpu_custom_call.1} parent=1 // pred_region
      %s14 = ssub.s32 12288, 12288
      %15 = vsyncadd [#allocation3], %s14
      %s16 = sshll.u32 [#allocation2], 4
      %s17 = int_to_ptr.vmem [resolvable:$true] %s16
      %22 = dma.hbm_to_vmem [thread:$0]  %s0, 12288, %s17, [#allocation3], 64, 64, 4
    $region5: #{tpu_custom_call.1} parent=1 // pred_fallthru
      _
    // Predicated region
    $region6: #{tpu_custom_call.1} parent=1 // pred_check
      _
    $region7: #{tpu_custom_call.1} parent=1 // pred_check_branch
      %24 = sbr.rel (0) target = $region9
    $region8: #{tpu_custom_call.1} parent=1 // pred_region
      %s26 = ssub.s32 192, 192
      %27 = vsyncadd [#allocation6], %s26
      %s28 = sshll.u32 [#allocation5], 4
      %s29 = int_to_ptr.vmem [resolvable:$true] %s28
      %34 = dma.hbm_to_vmem [thread:$0]  %s1, 192, %s29, [#allocation6], 16, 16, 1
    $region9: #{tpu_custom_call.1} parent=1 // pred_fallthru
      _
    // Predicated region
    $region10: #{tpu_custom_call.1} parent=1 // pred_check
      _
    $region11: #{tpu_custom_call.1} parent=1 // pred_check_branch
      %36 = sbr.rel (0) target = $region13
    $region12: #{tpu_custom_call.1} parent=1 // pred_region
      %s38 = ssub.s32 128, 128
      %39 = vsyncadd [#allocation6], %s38
      %s41 = sshll.u32 [#allocation7], 4
      %s42 = int_to_ptr.vmem [resolvable:$true] %s41
      %44 = dma.hbm_to_vmem [thread:$0]  %s2, 128, %s42, [#allocation6]
    $region13: #{tpu_custom_call.1} parent=1 // pred_fallthru
      _
    // Predicated region
    $region14: #{tpu_custom_call.1} parent=1 // pred_check
      _
    $region15: #{tpu_custom_call.1} parent=1 // pred_check_branch
      %46 = sbr.rel (0) target = $region17
    $region16: #{tpu_custom_call.1} parent=1 // pred_region
      %47 = dma.done [#allocation3], 12288
    $region17: #{tpu_custom_call.1} parent=1 // pred_fallthru
      _
    // Predicated region
    $region18: #{tpu_custom_call.1} parent=1 // pred_check
      _
    $region19: #{tpu_custom_call.1} parent=1 // pred_check_branch
      %49 = sbr.rel (0) target = $region21
    $region20: #{tpu_custom_call.1} parent=1 // pred_region
      %50 = dma.done [#allocation6], 192
    $region21: #{tpu_custom_call.1} parent=1 // pred_fallthru
      _
    // Predicated region
    $region22: #{tpu_custom_call.1} parent=1 // pred_check
      _
    $region23: #{tpu_custom_call.1} parent=1 // pred_check_branch
      %52 = sbr.rel (0) target = $region25
    $region24: #{tpu_custom_call.1} parent=1 // pred_region
      %53 = dma.done [#allocation6], 128
    $region25: #{tpu_custom_call.1} parent=1 // pred_fallthru
      _
    %v55 = vld [vmem:[#allocation7] sm:$0xff]
    %v56 = vld [vmem:[#allocation2] sm:$0xf]
    %v57 = vld [vmem:[#allocation2 + $0x4] sm:$0xf]
    %v58 = vld [vmem:[#allocation2 + $0x8] sm:$0xf]
    %v59 = vld [vmem:[#allocation2 + $0xc] sm:$0xf]
    %v60 = vld [vmem:[#allocation2 + $0x10] sm:$0xf]
    %v61 = vld [vmem:[#allocation2 + $0x14] sm:$0xf]
    %v62 = vld [vmem:[#allocation2 + $0x18] sm:$0xf]
    %v63 = vld [vmem:[#allocation2 + $0x1c] sm:$0xf]
    %v64 = vld [vmem:[#allocation2 + $0x20] sm:$0xf]
    %v65 = vld [vmem:[#allocation2 + $0x24] sm:$0xf]
    %v66 = vld [vmem:[#allocation2 + $0x28] sm:$0xf]
    %v67 = vld [vmem:[#allocation2 + $0x2c] sm:$0xf]
    %v68 = vld [vmem:[#allocation2 + $0x30] sm:$0xf]
    %v69 = vld [vmem:[#allocation2 + $0x34] sm:$0xf]
    %v70 = vld [vmem:[#allocation2 + $0x38] sm:$0xf]
    %v71 = vld [vmem:[#allocation2 + $0x3c] sm:$0xf]
    %v72 = vpack.c.bf16 %v55, %v55
    %v73 = vld [vmem:[#allocation5] sm:$0x1]
    %v75 = vlaneseq
    %v76 = vshrl.u32 %v75, 7
    %v77 = vsub.s32 0, %v76
    %v78 = vrot.slane %v73, %v77
    %v96 = vunpack.c.l.b16 %v56
    %v97 = vunpack.c.l.b16 %v57
    %v98 = vunpack.c.l.b16 %v58
    %v99 = vunpack.c.l.b16 %v59
    %v100 = vunpack.c.l.b16 %v60
    %v101 = vunpack.c.l.b16 %v61
    %v102 = vunpack.c.l.b16 %v62
    %v103 = vunpack.c.l.b16 %v63
    %v104 = vunpack.c.l.b16 %v64
    %v105 = vunpack.c.l.b16 %v65
    %v106 = vunpack.c.l.b16 %v66
    %v107 = vunpack.c.l.b16 %v67
    %v108 = vunpack.c.l.b16 %v68
    %v109 = vunpack.c.l.b16 %v69
    %v110 = vunpack.c.l.b16 %v70
    %v111 = vunpack.c.l.b16 %v71
    %v112 = vpack.c.b16 %v97, %v96
    %v113 = vpack.c.b16 %v99, %v98
    %v114 = vpack.c.b16 %v101, %v100
    %v115 = vpack.c.b16 %v103, %v102
    %v116 = vpack.c.b16 %v105, %v104
    %v117 = vpack.c.b16 %v107, %v106
    %v118 = vpack.c.b16 %v109, %v108
    %v119 = vpack.c.b16 %v111, %v110
    %128 = vmatprep.subr.bf16.mxu0 0
    %129 = vmatpush1.bf16.msra.mxu0 %v119
    %130 = vmatprep.subr.bf16.mxu0 0
    %131 = vmatpush1.bf16.msra.mxu0 %v118
    %132 = vmatprep.subr.bf16.mxu0 0
    %133 = vmatpush1.bf16.msra.mxu0 %v117
    %134 = vmatprep.subr.bf16.mxu0 0
    %135 = vmatpush1.bf16.msra.mxu0 %v116
    %136 = vmatprep.subr.bf16.mxu0 0
    %137 = vmatpush1.bf16.msra.mxu0 %v115
    %138 = vmatprep.subr.bf16.mxu0 0
    %139 = vmatpush1.bf16.msra.mxu0 %v114
    %140 = vmatprep.subr.bf16.mxu0 0
    %141 = vmatpush1.bf16.msra.mxu0 %v113
    %142 = vmatprep.subr.bf16.mxu0 0
    %143 = vmatpush1.bf16.msra.mxu0 %v112
    %144 = vmatprep.subr.bf16.mxu0 0
    %145 = vmatpush2.bf16.msra.mxu0 0
    %146 = vmatprep.subr.bf16.mxu0 0
    %147 = vmatpush2.bf16.msra.mxu0 0
    %148 = vmatprep.subr.bf16.mxu0 0
    %149 = vmatpush2.bf16.msra.mxu0 0
    %150 = vmatprep.subr.bf16.mxu0 0
    %151 = vmatpush2.bf16.msra.mxu0 0
    %152 = vmatprep.subr.bf16.mxu0 0
    %153 = vmatpush2.bf16.msra.mxu0 0
    %154 = vmatprep.subr.bf16.mxu0 0
    %155 = vmatpush2.bf16.msra.mxu0 0
    %156 = vmatprep.subr.bf16.mxu0 0
    %157 = vmatpush2.bf16.msra.mxu0 0
    %158 = vmatprep.subr.bf16.mxu0 0
    %159 = vmatpush2.bf16.msra.mxu0 0
    %160 = vmatprep.mubr.bf16.mxu0 0
    %161 = vmatmul.mubr.bf16.gmra.mxu0 %v72
    %v162 = vpop.f32.mrf.mxu0
    %v163 = vadd.f32 %v78, %v162
    %v164 = vpop.f32.mrf.mxu0
    %v165 = vpop.f32.mrf.mxu0
    %v166 = vpop.f32.mrf.mxu0
    %167 = vdwg.mxu0
    %v168 = vmax.f32 %v163, 0.0
    %s169 = scalar_lea.vmem [#allocation2], 64
    %v170 = vld [vmem:[%s169] sm:$0xf]
    %v171 = vld [vmem:[%s169 + $0x4] sm:$0xf]
    %v172 = vld [vmem:[%s169 + $0x8] sm:$0xf]
    %v173 = vld [vmem:[%s169 + $0xc] sm:$0xf]
    %v174 = vld [vmem:[%s169 + $0x10] sm:$0xf]
    %v175 = vld [vmem:[%s169 + $0x14] sm:$0xf]
    %v176 = vld [vmem:[%s169 + $0x18] sm:$0xf]
    %v177 = vld [vmem:[%s169 + $0x1c] sm:$0xf]
    %v178 = vld [vmem:[%s169 + $0x20] sm:$0xf]
    %v179 = vld [vmem:[%s169 + $0x24] sm:$0xf]
    %v180 = vld [vmem:[%s169 + $0x28] sm:$0xf]
    %v181 = vld [vmem:[%s169 + $0x2c] sm:$0xf]
    %v182 = vld [vmem:[%s169 + $0x30] sm:$0xf]
    %v183 = vld [vmem:[%s169 + $0x34] sm:$0xf]
    %v184 = vld [vmem:[%s169 + $0x38] sm:$0xf]
    %v185 = vld [vmem:[%s169 + $0x3c] sm:$0xf]
    %v186 = vpack.c.bf16 %v168, %v168
    %s187 = scalar_lea.vmem [#allocation5], 1
    %v188 = vld [vmem:[%s187] sm:$0x1]
    %v190 = vlaneseq
    %v191 = vshrl.u32 %v190, 7
    %v192 = vsub.s32 0, %v191
    %v193 = vrot.slane %v188, %v192
    %v211 = vunpack.c.l.b16 %v170
    %v212 = vunpack.c.l.b16 %v171
    %v213 = vunpack.c.l.b16 %v172
    %v214 = vunpack.c.l.b16 %v173
    %v215 = vunpack.c.l.b16 %v174
    %v216 = vunpack.c.l.b16 %v175
    %v217 = vunpack.c.l.b16 %v176
    %v218 = vunpack.c.l.b16 %v177
    %v219 = vunpack.c.l.b16 %v178
    %v220 = vunpack.c.l.b16 %v179
    %v221 = vunpack.c.l.b16 %v180
    %v222 = vunpack.c.l.b16 %v181
    %v223 = vunpack.c.l.b16 %v182
    %v224 = vunpack.c.l.b16 %v183
    %v225 = vunpack.c.l.b16 %v184
    %v226 = vunpack.c.l.b16 %v185
    %v227 = vpack.c.b16 %v212, %v211
    %v228 = vpack.c.b16 %v214, %v213
    %v229 = vpack.c.b16 %v216, %v215
    %v230 = vpack.c.b16 %v218, %v217
    %v231 = vpack.c.b16 %v220, %v219
    %v232 = vpack.c.b16 %v222, %v221
    %v233 = vpack.c.b16 %v224, %v223
    %v234 = vpack.c.b16 %v226, %v225
    %243 = vmatprep.subr.bf16.mxu0 0
    %244 = vmatpush1.bf16.msra.mxu0 %v234
    %245 = vmatprep.subr.bf16.mxu0 0
    %246 = vmatpush1.bf16.msra.mxu0 %v233
    %247 = vmatprep.subr.bf16.mxu0 0
    %248 = vmatpush1.bf16.msra.mxu0 %v232
    %249 = vmatprep.subr.bf16.mxu0 0
    %250 = vmatpush1.bf16.msra.mxu0 %v231
    %251 = vmatprep.subr.bf16.mxu0 0
    %252 = vmatpush1.bf16.msra.mxu0 %v230
    %253 = vmatprep.subr.bf16.mxu0 0
    %254 = vmatpush1.bf16.msra.mxu0 %v229
    %255 = vmatprep.subr.bf16.mxu0 0
    %256 = vmatpush1.bf16.msra.mxu0 %v228
    %257 = vmatprep.subr.bf16.mxu0 0
    %258 = vmatpush1.bf16.msra.mxu0 %v227
    %259 = vmatprep.subr.bf16.mxu0 0
    %260 = vmatpush2.bf16.msra.mxu0 0
    %261 = vmatprep.subr.bf16.mxu0 0
    %262 = vmatpush2.bf16.msra.mxu0 0
    %263 = vmatprep.subr.bf16.mxu0 0
    %264 = vmatpush2.bf16.msra.mxu0 0
    %265 = vmatprep.subr.bf16.mxu0 0
    %266 = vmatpush2.bf16.msra.mxu0 0
    %267 = vmatprep.subr.bf16.mxu0 0
    %268 = vmatpush2.bf16.msra.mxu0 0
    %269 = vmatprep.subr.bf16.mxu0 0
    %270 = vmatpush2.bf16.msra.mxu0 0
    %271 = vmatprep.subr.bf16.mxu0 0
    %272 = vmatpush2.bf16.msra.mxu0 0
    %273 = vmatprep.subr.bf16.mxu0 0
    %274 = vmatpush2.bf16.msra.mxu0 0
    %275 = vmatprep.mubr.bf16.mxu0 0
    %276 = vmatmul.mubr.bf16.gmra.mxu0 %v186
    %v277 = vpop.f32.mrf.mxu0
    %v278 = vadd.f32 %v193, %v277
    %v279 = vpop.f32.mrf.mxu0
    %v280 = vpop.f32.mrf.mxu0
    %v281 = vpop.f32.mrf.mxu0
    %282 = vdwg.mxu0
    %v283 = vmax.f32 %v278, 0.0
    %s284 = scalar_lea.vmem [#allocation2], 128
    %v285 = vld [vmem:[%s284] sm:$0xf]
    %v286 = vld [vmem:[%s284 + $0x4] sm:$0xf]
    %v287 = vld [vmem:[%s284 + $0x8] sm:$0xf]
    %v288 = vld [vmem:[%s284 + $0xc] sm:$0xf]
    %v289 = vld [vmem:[%s284 + $0x10] sm:$0xf]
    %v290 = vld [vmem:[%s284 + $0x14] sm:$0xf]
    %v291 = vld [vmem:[%s284 + $0x18] sm:$0xf]
    %v292 = vld [vmem:[%s284 + $0x1c] sm:$0xf]
    %v293 = vld [vmem:[%s284 + $0x20] sm:$0xf]
    %v294 = vld [vmem:[%s284 + $0x24] sm:$0xf]
    %v295 = vld [vmem:[%s284 + $0x28] sm:$0xf]
    %v296 = vld [vmem:[%s284 + $0x2c] sm:$0xf]
    %v297 = vld [vmem:[%s284 + $0x30] sm:$0xf]
    %v298 = vld [vmem:[%s284 + $0x34] sm:$0xf]
    %v299 = vld [vmem:[%s284 + $0x38] sm:$0xf]
    %v300 = vld [vmem:[%s284 + $0x3c] sm:$0xf]
    %v301 = vpack.c.bf16 %v283, %v283
    %s302 = scalar_lea.vmem [#allocation5], 2
    %v303 = vld [vmem:[%s302] sm:$0x1]
    %v305 = vlaneseq
    %v306 = vshrl.u32 %v305, 7
    %v307 = vsub.s32 0, %v306
    %v308 = vrot.slane %v303, %v307
    %v326 = vunpack.c.l.b16 %v285
    %v327 = vunpack.c.l.b16 %v286
    %v328 = vunpack.c.l.b16 %v287
    %v329 = vunpack.c.l.b16 %v288
    %v330 = vunpack.c.l.b16 %v289
    %v331 = vunpack.c.l.b16 %v290
    %v332 = vunpack.c.l.b16 %v291
    %v333 = vunpack.c.l.b16 %v292
    %v334 = vunpack.c.l.b16 %v293
    %v335 = vunpack.c.l.b16 %v294
    %v336 = vunpack.c.l.b16 %v295
    %v337 = vunpack.c.l.b16 %v296
    %v338 = vunpack.c.l.b16 %v297
    %v339 = vunpack.c.l.b16 %v298
    %v340 = vunpack.c.l.b16 %v299
    %v341 = vunpack.c.l.b16 %v300
    %v342 = vpack.c.b16 %v327, %v326
    %v343 = vpack.c.b16 %v329, %v328
    %v344 = vpack.c.b16 %v331, %v330
    %v345 = vpack.c.b16 %v333, %v332
    %v346 = vpack.c.b16 %v335, %v334
    %v347 = vpack.c.b16 %v337, %v336
    %v348 = vpack.c.b16 %v339, %v338
    %v349 = vpack.c.b16 %v341, %v340
    %358 = vmatprep.subr.bf16.mxu0 0
    %359 = vmatpush1.bf16.msra.mxu0 %v349
    %360 = vmatprep.subr.bf16.mxu0 0
    %361 = vmatpush1.bf16.msra.mxu0 %v348
    %362 = vmatprep.subr.bf16.mxu0 0
    %363 = vmatpush1.bf16.msra.mxu0 %v347
    %364 = vmatprep.subr.bf16.mxu0 0
    %365 = vmatpush1.bf16.msra.mxu0 %v346
    %366 = vmatprep.subr.bf16.mxu0 0
    %367 = vmatpush1.bf16.msra.mxu0 %v345
    %368 = vmatprep.subr.bf16.mxu0 0
    %369 = vmatpush1.bf16.msra.mxu0 %v344
    %370 = vmatprep.subr.bf16.mxu0 0
    %371 = vmatpush1.bf16.msra.mxu0 %v343
    %372 = vmatprep.subr.bf16.mxu0 0
    %373 = vmatpush1.bf16.msra.mxu0 %v342
    %374 = vmatprep.subr.bf16.mxu0 0
    %375 = vmatpush2.bf16.msra.mxu0 0
    %376 = vmatprep.subr.bf16.mxu0 0
    %377 = vmatpush2.bf16.msra.mxu0 0
    %378 = vmatprep.subr.bf16.mxu0 0
    %379 = vmatpush2.bf16.msra.mxu0 0
    %380 = vmatprep.subr.bf16.mxu0 0
    %381 = vmatpush2.bf16.msra.mxu0 0
    %382 = vmatprep.subr.bf16.mxu0 0
    %383 = vmatpush2.bf16.msra.mxu0 0
    %384 = vmatprep.subr.bf16.mxu0 0
    %385 = vmatpush2.bf16.msra.mxu0 0
    %386 = vmatprep.subr.bf16.mxu0 0
    %387 = vmatpush2.bf16.msra.mxu0 0
    %388 = vmatprep.subr.bf16.mxu0 0
    %389 = vmatpush2.bf16.msra.mxu0 0
    %390 = vmatprep.mubr.bf16.mxu0 0
    %391 = vmatmul.mubr.bf16.gmra.mxu0 %v301
    %v392 = vpop.f32.mrf.mxu0
    %v393 = vadd.f32 %v308, %v392
    %v394 = vpop.f32.mrf.mxu0
    %v395 = vpop.f32.mrf.mxu0
    %v396 = vpop.f32.mrf.mxu0
    %397 = vdwg.mxu0
    %v398 = vadd.f32 %v393, %v168
    %v399 = vmax.f32 %v398, 0.0
    %s400 = scalar_lea.vmem [#allocation2], 192
    %v401 = vld [vmem:[%s400] sm:$0xf]
    %v402 = vld [vmem:[%s400 + $0x4] sm:$0xf]
    %v403 = vld [vmem:[%s400 + $0x8] sm:$0xf]
    %v404 = vld [vmem:[%s400 + $0xc] sm:$0xf]
    %v405 = vld [vmem:[%s400 + $0x10] sm:$0xf]
    %v406 = vld [vmem:[%s400 + $0x14] sm:$0xf]
    %v407 = vld [vmem:[%s400 + $0x18] sm:$0xf]
    %v408 = vld [vmem:[%s400 + $0x1c] sm:$0xf]
    %v409 = vld [vmem:[%s400 + $0x20] sm:$0xf]
    %v410 = vld [vmem:[%s400 + $0x24] sm:$0xf]
    %v411 = vld [vmem:[%s400 + $0x28] sm:$0xf]
    %v412 = vld [vmem:[%s400 + $0x2c] sm:$0xf]
    %v413 = vld [vmem:[%s400 + $0x30] sm:$0xf]
    %v414 = vld [vmem:[%s400 + $0x34] sm:$0xf]
    %v415 = vld [vmem:[%s400 + $0x38] sm:$0xf]
    %v416 = vld [vmem:[%s400 + $0x3c] sm:$0xf]
    %v417 = vpack.c.bf16 %v399, %v399
    %s418 = scalar_lea.vmem [#allocation5], 3
    %v419 = vld [vmem:[%s418] sm:$0x1]
    %v421 = vlaneseq
    %v422 = vshrl.u32 %v421, 7
    %v423 = vsub.s32 0, %v422
    %v424 = vrot.slane %v419, %v423
    %v442 = vunpack.c.l.b16 %v401
    %v443 = vunpack.c.l.b16 %v402
    %v444 = vunpack.c.l.b16 %v403
    %v445 = vunpack.c.l.b16 %v404
    %v446 = vunpack.c.l.b16 %v405
    %v447 = vunpack.c.l.b16 %v406
    %v448 = vunpack.c.l.b16 %v407
    %v449 = vunpack.c.l.b16 %v408
    %v450 = vunpack.c.l.b16 %v409
    %v451 = vunpack.c.l.b16 %v410
    %v452 = vunpack.c.l.b16 %v411
    %v453 = vunpack.c.l.b16 %v412
    %v454 = vunpack.c.l.b16 %v413
    %v455 = vunpack.c.l.b16 %v414
    %v456 = vunpack.c.l.b16 %v415
    %v457 = vunpack.c.l.b16 %v416
    %v458 = vpack.c.b16 %v443, %v442
    %v459 = vpack.c.b16 %v445, %v444
    %v460 = vpack.c.b16 %v447, %v446
    %v461 = vpack.c.b16 %v449, %v448
    %v462 = vpack.c.b16 %v451, %v450
    %v463 = vpack.c.b16 %v453, %v452
    %v464 = vpack.c.b16 %v455, %v454
    %v465 = vpack.c.b16 %v457, %v456
    %474 = vmatprep.subr.bf16.mxu0 0
    %475 = vmatpush1.bf16.msra.mxu0 %v465
    %476 = vmatprep.subr.bf16.mxu0 0
    %477 = vmatpush1.bf16.msra.mxu0 %v464
    %478 = vmatprep.subr.bf16.mxu0 0
    %479 = vmatpush1.bf16.msra.mxu0 %v463
    %480 = vmatprep.subr.bf16.mxu0 0
    %481 = vmatpush1.bf16.msra.mxu0 %v462
    %482 = vmatprep.subr.bf16.mxu0 0
    %483 = vmatpush1.bf16.msra.mxu0 %v461
    %484 = vmatprep.subr.bf16.mxu0 0
    %485 = vmatpush1.bf16.msra.mxu0 %v460
    %486 = vmatprep.subr.bf16.mxu0 0
    %487 = vmatpush1.bf16.msra.mxu0 %v459
    %488 = vmatprep.subr.bf16.mxu0 0
    %489 = vmatpush1.bf16.msra.mxu0 %v458
    %490 = vmatprep.subr.bf16.mxu0 0
    %491 = vmatpush2.bf16.msra.mxu0 0
    %492 = vmatprep.subr.bf16.mxu0 0
    %493 = vmatpush2.bf16.msra.mxu0 0
    %494 = vmatprep.subr.bf16.mxu0 0
    %495 = vmatpush2.bf16.msra.mxu0 0
    %496 = vmatprep.subr.bf16.mxu0 0
    %497 = vmatpush2.bf16.msra.mxu0 0
    %498 = vmatprep.subr.bf16.mxu0 0
    %499 = vmatpush2.bf16.msra.mxu0 0
    %500 = vmatprep.subr.bf16.mxu0 0
    %501 = vmatpush2.bf16.msra.mxu0 0
    %502 = vmatprep.subr.bf16.mxu0 0
    %503 = vmatpush2.bf16.msra.mxu0 0
    %504 = vmatprep.subr.bf16.mxu0 0
    %505 = vmatpush2.bf16.msra.mxu0 0
    %506 = vmatprep.mubr.bf16.mxu0 0
    %507 = vmatmul.mubr.bf16.gmra.mxu0 %v417
    %v508 = vpop.f32.mrf.mxu0
    %v509 = vadd.f32 %v424, %v508
    %v510 = vpop.f32.mrf.mxu0
    %v511 = vpop.f32.mrf.mxu0
    %v512 = vpop.f32.mrf.mxu0
    %513 = vdwg.mxu0
    %v514 = vmax.f32 %v509, 0.0
    %s515 = scalar_lea.vmem [#allocation2], 256
    %v516 = vld [vmem:[%s515] sm:$0xf]
    %v517 = vld [vmem:[%s515 + $0x4] sm:$0xf]
    %v518 = vld [vmem:[%s515 + $0x8] sm:$0xf]
    %v519 = vld [vmem:[%s515 + $0xc] sm:$0xf]
    %v520 = vld [vmem:[%s515 + $0x10] sm:$0xf]
    %v521 = vld [vmem:[%s515 + $0x14] sm:$0xf]
    %v522 = vld [vmem:[%s515 + $0x18] sm:$0xf]
    %v523 = vld [vmem:[%s515 + $0x1c] sm:$0xf]
    %v524 = vld [vmem:[%s515 + $0x20] sm:$0xf]
    %v525 = vld [vmem:[%s515 + $0x24] sm:$0xf]
    %v526 = vld [vmem:[%s515 + $0x28] sm:$0xf]
    %v527 = vld [vmem:[%s515 + $0x2c] sm:$0xf]
    %v528 = vld [vmem:[%s515 + $0x30] sm:$0xf]
    %v529 = vld [vmem:[%s515 + $0x34] sm:$0xf]
    %v530 = vld [vmem:[%s515 + $0x38] sm:$0xf]
    %v531 = vld [vmem:[%s515 + $0x3c] sm:$0xf]
    %v532 = vpack.c.bf16 %v514, %v514
    %s533 = scalar_lea.vmem [#allocation5], 4
    %v534 = vld [vmem:[%s533] sm:$0x1]
    %v536 = vlaneseq
    %v537 = vshrl.u32 %v536, 7
    %v538 = vsub.s32 0, %v537
    %v539 = vrot.slane %v534, %v538
    %v557 = vunpack.c.l.b16 %v516
    %v558 = vunpack.c.l.b16 %v517
    %v559 = vunpack.c.l.b16 %v518
    %v560 = vunpack.c.l.b16 %v519
    %v561 = vunpack.c.l.b16 %v520
    %v562 = vunpack.c.l.b16 %v521
    %v563 = vunpack.c.l.b16 %v522
    %v564 = vunpack.c.l.b16 %v523
    %v565 = vunpack.c.l.b16 %v524
    %v566 = vunpack.c.l.b16 %v525
    %v567 = vunpack.c.l.b16 %v526
    %v568 = vunpack.c.l.b16 %v527
    %v569 = vunpack.c.l.b16 %v528
    %v570 = vunpack.c.l.b16 %v529
    %v571 = vunpack.c.l.b16 %v530
    %v572 = vunpack.c.l.b16 %v531
    %v573 = vpack.c.b16 %v558, %v557
    %v574 = vpack.c.b16 %v560, %v559
    %v575 = vpack.c.b16 %v562, %v561
    %v576 = vpack.c.b16 %v564, %v563
    %v577 = vpack.c.b16 %v566, %v565
    %v578 = vpack.c.b16 %v568, %v567
    %v579 = vpack.c.b16 %v570, %v569
    %v580 = vpack.c.b16 %v572, %v571
    %589 = vmatprep.subr.bf16.mxu0 0
    %590 = vmatpush1.bf16.msra.mxu0 %v580
    %591 = vmatprep.subr.bf16.mxu0 0
    %592 = vmatpush1.bf16.msra.mxu0 %v579
    %593 = vmatprep.subr.bf16.mxu0 0
    %594 = vmatpush1.bf16.msra.mxu0 %v578
    %595 = vmatprep.subr.bf16.mxu0 0
    %596 = vmatpush1.bf16.msra.mxu0 %v577
    %597 = vmatprep.subr.bf16.mxu0 0
    %598 = vmatpush1.bf16.msra.mxu0 %v576
    %599 = vmatprep.subr.bf16.mxu0 0
    %600 = vmatpush1.bf16.msra.mxu0 %v575
    %601 = vmatprep.subr.bf16.mxu0 0
    %602 = vmatpush1.bf16.msra.mxu0 %v574
    %603 = vmatprep.subr.bf16.mxu0 0
    %604 = vmatpush1.bf16.msra.mxu0 %v573
    %605 = vmatprep.subr.bf16.mxu0 0
    %606 = vmatpush2.bf16.msra.mxu0 0
    %607 = vmatprep.subr.bf16.mxu0 0
    %608 = vmatpush2.bf16.msra.mxu0 0
    %609 = vmatprep.subr.bf16.mxu0 0
    %610 = vmatpush2.bf16.msra.mxu0 0
    %611 = vmatprep.subr.bf16.mxu0 0
    %612 = vmatpush2.bf16.msra.mxu0 0
    %613 = vmatprep.subr.bf16.mxu0 0
    %614 = vmatpush2.bf16.msra.mxu0 0
    %615 = vmatprep.subr.bf16.mxu0 0
    %616 = vmatpush2.bf16.msra.mxu0 0
    %617 = vmatprep.subr.bf16.mxu0 0
    %618 = vmatpush2.bf16.msra.mxu0 0
    %619 = vmatprep.subr.bf16.mxu0 0
    %620 = vmatpush2.bf16.msra.mxu0 0
    %621 = vmatprep.mubr.bf16.mxu0 0
    %622 = vmatmul.mubr.bf16.gmra.mxu0 %v532
    %v623 = vpop.f32.mrf.mxu0
    %v624 = vadd.f32 %v539, %v623
    %v625 = vpop.f32.mrf.mxu0
    %v626 = vpop.f32.mrf.mxu0
    %v627 = vpop.f32.mrf.mxu0
    %628 = vdwg.mxu0
    %v629 = vadd.f32 %v624, %v399
    %v630 = vmax.f32 %v629, 0.0
    %s631 = scalar_lea.vmem [#allocation2], 320
    %v632 = vld [vmem:[%s631] sm:$0xf]
    %v633 = vld [vmem:[%s631 + $0x4] sm:$0xf]
    %v634 = vld [vmem:[%s631 + $0x8] sm:$0xf]
    %v635 = vld [vmem:[%s631 + $0xc] sm:$0xf]
    %v636 = vld [vmem:[%s631 + $0x10] sm:$0xf]
    %v637 = vld [vmem:[%s631 + $0x14] sm:$0xf]
    %v638 = vld [vmem:[%s631 + $0x18] sm:$0xf]
    %v639 = vld [vmem:[%s631 + $0x1c] sm:$0xf]
    %v640 = vld [vmem:[%s631 + $0x20] sm:$0xf]
    %v641 = vld [vmem:[%s631 + $0x24] sm:$0xf]
    %v642 = vld [vmem:[%s631 + $0x28] sm:$0xf]
    %v643 = vld [vmem:[%s631 + $0x2c] sm:$0xf]
    %v644 = vld [vmem:[%s631 + $0x30] sm:$0xf]
    %v645 = vld [vmem:[%s631 + $0x34] sm:$0xf]
    %v646 = vld [vmem:[%s631 + $0x38] sm:$0xf]
    %v647 = vld [vmem:[%s631 + $0x3c] sm:$0xf]
    %v648 = vpack.c.bf16 %v630, %v630
    %s649 = scalar_lea.vmem [#allocation5], 5
    %v650 = vld [vmem:[%s649] sm:$0x1]
    %v652 = vlaneseq
    %v653 = vshrl.u32 %v652, 7
    %v654 = vsub.s32 0, %v653
    %v655 = vrot.slane %v650, %v654
    %v673 = vunpack.c.l.b16 %v632
    %v674 = vunpack.c.l.b16 %v633
    %v675 = vunpack.c.l.b16 %v634
    %v676 = vunpack.c.l.b16 %v635
    %v677 = vunpack.c.l.b16 %v636
    %v678 = vunpack.c.l.b16 %v637
    %v679 = vunpack.c.l.b16 %v638
    %v680 = vunpack.c.l.b16 %v639
    %v681 = vunpack.c.l.b16 %v640
    %v682 = vunpack.c.l.b16 %v641
    %v683 = vunpack.c.l.b16 %v642
    %v684 = vunpack.c.l.b16 %v643
    %v685 = vunpack.c.l.b16 %v644
    %v686 = vunpack.c.l.b16 %v645
    %v687 = vunpack.c.l.b16 %v646
    %v688 = vunpack.c.l.b16 %v647
    %v689 = vpack.c.b16 %v674, %v673
    %v690 = vpack.c.b16 %v676, %v675
    %v691 = vpack.c.b16 %v678, %v677
    %v692 = vpack.c.b16 %v680, %v679
    %v693 = vpack.c.b16 %v682, %v681
    %v694 = vpack.c.b16 %v684, %v683
    %v695 = vpack.c.b16 %v686, %v685
    %v696 = vpack.c.b16 %v688, %v687
    %705 = vmatprep.subr.bf16.mxu0 0
    %706 = vmatpush1.bf16.msra.mxu0 %v696
    %707 = vmatprep.subr.bf16.mxu0 0
    %708 = vmatpush1.bf16.msra.mxu0 %v695
    %709 = vmatprep.subr.bf16.mxu0 0
    %710 = vmatpush1.bf16.msra.mxu0 %v694
    %711 = vmatprep.subr.bf16.mxu0 0
    %712 = vmatpush1.bf16.msra.mxu0 %v693
    %713 = vmatprep.subr.bf16.mxu0 0
    %714 = vmatpush1.bf16.msra.mxu0 %v692
    %715 = vmatprep.subr.bf16.mxu0 0
    %716 = vmatpush1.bf16.msra.mxu0 %v691
    %717 = vmatprep.subr.bf16.mxu0 0
    %718 = vmatpush1.bf16.msra.mxu0 %v690
    %719 = vmatprep.subr.bf16.mxu0 0
    %720 = vmatpush1.bf16.msra.mxu0 %v689
    %721 = vmatprep.subr.bf16.mxu0 0
    %722 = vmatpush2.bf16.msra.mxu0 0
    %723 = vmatprep.subr.bf16.mxu0 0
    %724 = vmatpush2.bf16.msra.mxu0 0
    %725 = vmatprep.subr.bf16.mxu0 0
    %726 = vmatpush2.bf16.msra.mxu0 0
    %727 = vmatprep.subr.bf16.mxu0 0
    %728 = vmatpush2.bf16.msra.mxu0 0
    %729 = vmatprep.subr.bf16.mxu0 0
    %730 = vmatpush2.bf16.msra.mxu0 0
    %731 = vmatprep.subr.bf16.mxu0 0
    %732 = vmatpush2.bf16.msra.mxu0 0
    %733 = vmatprep.subr.bf16.mxu0 0
    %734 = vmatpush2.bf16.msra.mxu0 0
    %735 = vmatprep.subr.bf16.mxu0 0
    %736 = vmatpush2.bf16.msra.mxu0 0
    %737 = vmatprep.mubr.bf16.mxu0 0
    %738 = vmatmul.mubr.bf16.gmra.mxu0 %v648
    %v739 = vpop.f32.mrf.mxu0
    %v740 = vadd.f32 %v655, %v739
    %v741 = vpop.f32.mrf.mxu0
    %v742 = vpop.f32.mrf.mxu0
    %v743 = vpop.f32.mrf.mxu0
    %744 = vdwg.mxu0
    %v745 = vmax.f32 %v740, 0.0
    %s746 = scalar_lea.vmem [#allocation2], 384
    %v747 = vld [vmem:[%s746] sm:$0xf]
    %v748 = vld [vmem:[%s746 + $0x4] sm:$0xf]
    %v749 = vld [vmem:[%s746 + $0x8] sm:$0xf]
    %v750 = vld [vmem:[%s746 + $0xc] sm:$0xf]
    %v751 = vld [vmem:[%s746 + $0x10] sm:$0xf]
    %v752 = vld [vmem:[%s746 + $0x14] sm:$0xf]
    %v753 = vld [vmem:[%s746 + $0x18] sm:$0xf]
    %v754 = vld [vmem:[%s746 + $0x1c] sm:$0xf]
    %v755 = vld [vmem:[%s746 + $0x20] sm:$0xf]
    %v756 = vld [vmem:[%s746 + $0x24] sm:$0xf]
    %v757 = vld [vmem:[%s746 + $0x28] sm:$0xf]
    %v758 = vld [vmem:[%s746 + $0x2c] sm:$0xf]
    %v759 = vld [vmem:[%s746 + $0x30] sm:$0xf]
    %v760 = vld [vmem:[%s746 + $0x34] sm:$0xf]
    %v761 = vld [vmem:[%s746 + $0x38] sm:$0xf]
    %v762 = vld [vmem:[%s746 + $0x3c] sm:$0xf]
    %v763 = vpack.c.bf16 %v745, %v745
    %s764 = scalar_lea.vmem [#allocation5], 6
    %v765 = vld [vmem:[%s764] sm:$0x1]
    %v767 = vlaneseq
    %v768 = vshrl.u32 %v767, 7
    %v769 = vsub.s32 0, %v768
    %v770 = vrot.slane %v765, %v769
    %v788 = vunpack.c.l.b16 %v747
    %v789 = vunpack.c.l.b16 %v748
    %v790 = vunpack.c.l.b16 %v749
    %v791 = vunpack.c.l.b16 %v750
    %v792 = vunpack.c.l.b16 %v751
    %v793 = vunpack.c.l.b16 %v752
    %v794 = vunpack.c.l.b16 %v753
    %v795 = vunpack.c.l.b16 %v754
    %v796 = vunpack.c.l.b16 %v755
    %v797 = vunpack.c.l.b16 %v756
    %v798 = vunpack.c.l.b16 %v757
    %v799 = vunpack.c.l.b16 %v758
    %v800 = vunpack.c.l.b16 %v759
    %v801 = vunpack.c.l.b16 %v760
    %v802 = vunpack.c.l.b16 %v761
    %v803 = vunpack.c.l.b16 %v762
    %v804 = vpack.c.b16 %v789, %v788
    %v805 = vpack.c.b16 %v791, %v790
    %v806 = vpack.c.b16 %v793, %v792
    %v807 = vpack.c.b16 %v795, %v794
    %v808 = vpack.c.b16 %v797, %v796
    %v809 = vpack.c.b16 %v799, %v798
    %v810 = vpack.c.b16 %v801, %v800
    %v811 = vpack.c.b16 %v803, %v802
    %820 = vmatprep.subr.bf16.mxu0 0
    %821 = vmatpush1.bf16.msra.mxu0 %v811
    %822 = vmatprep.subr.bf16.mxu0 0
    %823 = vmatpush1.bf16.msra.mxu0 %v810
    %824 = vmatprep.subr.bf16.mxu0 0
    %825 = vmatpush1.bf16.msra.mxu0 %v809
    %826 = vmatprep.subr.bf16.mxu0 0
    %827 = vmatpush1.bf16.msra.mxu0 %v808
    %828 = vmatprep.subr.bf16.mxu0 0
    %829 = vmatpush1.bf16.msra.mxu0 %v807
    %830 = vmatprep.subr.bf16.mxu0 0
    %831 = vmatpush1.bf16.msra.mxu0 %v806
    %832 = vmatprep.subr.bf16.mxu0 0
    %833 = vmatpush1.bf16.msra.mxu0 %v805
    %834 = vmatprep.subr.bf16.mxu0 0
    %835 = vmatpush1.bf16.msra.mxu0 %v804
    %836 = vmatprep.subr.bf16.mxu0 0
    %837 = vmatpush2.bf16.msra.mxu0 0
    %838 = vmatprep.subr.bf16.mxu0 0
    %839 = vmatpush2.bf16.msra.mxu0 0
    %840 = vmatprep.subr.bf16.mxu0 0
    %841 = vmatpush2.bf16.msra.mxu0 0
    %842 = vmatprep.subr.bf16.mxu0 0
    %843 = vmatpush2.bf16.msra.mxu0 0
    %844 = vmatprep.subr.bf16.mxu0 0
    %845 = vmatpush2.bf16.msra.mxu0 0
    %846 = vmatprep.subr.bf16.mxu0 0
    %847 = vmatpush2.bf16.msra.mxu0 0
    %848 = vmatprep.subr.bf16.mxu0 0
    %849 = vmatpush2.bf16.msra.mxu0 0
    %850 = vmatprep.subr.bf16.mxu0 0
    %851 = vmatpush2.bf16.msra.mxu0 0
    %852 = vmatprep.mubr.bf16.mxu0 0
    %853 = vmatmul.mubr.bf16.gmra.mxu0 %v763
    %v854 = vpop.f32.mrf.mxu0
    %v855 = vadd.f32 %v770, %v854
    %v856 = vpop.f32.mrf.mxu0
    %v857 = vpop.f32.mrf.mxu0
    %v858 = vpop.f32.mrf.mxu0
    %859 = vdwg.mxu0
    %v860 = vadd.f32 %v855, %v630
    %v861 = vmax.f32 %v860, 0.0
    %s862 = scalar_lea.vmem [#allocation2], 448
    %v863 = vld [vmem:[%s862] sm:$0xf]
    %v864 = vld [vmem:[%s862 + $0x4] sm:$0xf]
    %v865 = vld [vmem:[%s862 + $0x8] sm:$0xf]
    %v866 = vld [vmem:[%s862 + $0xc] sm:$0xf]
    %v867 = vld [vmem:[%s862 + $0x10] sm:$0xf]
    %v868 = vld [vmem:[%s862 + $0x14] sm:$0xf]
    %v869 = vld [vmem:[%s862 + $0x18] sm:$0xf]
    %v870 = vld [vmem:[%s862 + $0x1c] sm:$0xf]
    %v871 = vld [vmem:[%s862 + $0x20] sm:$0xf]
    %v872 = vld [vmem:[%s862 + $0x24] sm:$0xf]
    %v873 = vld [vmem:[%s862 + $0x28] sm:$0xf]
    %v874 = vld [vmem:[%s862 + $0x2c] sm:$0xf]
    %v875 = vld [vmem:[%s862 + $0x30] sm:$0xf]
    %v876 = vld [vmem:[%s862 + $0x34] sm:$0xf]
    %v877 = vld [vmem:[%s862 + $0x38] sm:$0xf]
    %v878 = vld [vmem:[%s862 + $0x3c] sm:$0xf]
    %v879 = vpack.c.bf16 %v861, %v861
    %s880 = scalar_lea.vmem [#allocation5], 7
    %v881 = vld [vmem:[%s880] sm:$0x1]
    %v883 = vlaneseq
    %v884 = vshrl.u32 %v883, 7
    %v885 = vsub.s32 0, %v884
    %v886 = vrot.slane %v881, %v885
    %v904 = vunpack.c.l.b16 %v863
    %v905 = vunpack.c.l.b16 %v864
    %v906 = vunpack.c.l.b16 %v865
    %v907 = vunpack.c.l.b16 %v866
    %v908 = vunpack.c.l.b16 %v867
    %v909 = vunpack.c.l.b16 %v868
    %v910 = vunpack.c.l.b16 %v869
    %v911 = vunpack.c.l.b16 %v870
    %v912 = vunpack.c.l.b16 %v871
    %v913 = vunpack.c.l.b16 %v872
    %v914 = vunpack.c.l.b16 %v873
    %v915 = vunpack.c.l.b16 %v874
    %v916 = vunpack.c.l.b16 %v875
    %v917 = vunpack.c.l.b16 %v876
    %v918 = vunpack.c.l.b16 %v877
    %v919 = vunpack.c.l.b16 %v878
    %v920 = vpack.c.b16 %v905, %v904
    %v921 = vpack.c.b16 %v907, %v906
    %v922 = vpack.c.b16 %v909, %v908
    %v923 = vpack.c.b16 %v911, %v910
    %v924 = vpack.c.b16 %v913, %v912
    %v925 = vpack.c.b16 %v915, %v914
    %v926 = vpack.c.b16 %v917, %v916
    %v927 = vpack.c.b16 %v919, %v918
    %936 = vmatprep.subr.bf16.mxu0 0
    %937 = vmatpush1.bf16.msra.mxu0 %v927
    %938 = vmatprep.subr.bf16.mxu0 0
    %939 = vmatpush1.bf16.msra.mxu0 %v926
    %940 = vmatprep.subr.bf16.mxu0 0
    %941 = vmatpush1.bf16.msra.mxu0 %v925
    %942 = vmatprep.subr.bf16.mxu0 0
    %943 = vmatpush1.bf16.msra.mxu0 %v924
    %944 = vmatprep.subr.bf16.mxu0 0
    %945 = vmatpush1.bf16.msra.mxu0 %v923
    %946 = vmatprep.subr.bf16.mxu0 0
    %947 = vmatpush1.bf16.msra.mxu0 %v922
    %948 = vmatprep.subr.bf16.mxu0 0
    %949 = vmatpush1.bf16.msra.mxu0 %v921
    %950 = vmatprep.subr.bf16.mxu0 0
    %951 = vmatpush1.bf16.msra.mxu0 %v920
    %952 = vmatprep.subr.bf16.mxu0 0
    %953 = vmatpush2.bf16.msra.mxu0 0
    %954 = vmatprep.subr.bf16.mxu0 0
    %955 = vmatpush2.bf16.msra.mxu0 0
    %956 = vmatprep.subr.bf16.mxu0 0
    %957 = vmatpush2.bf16.msra.mxu0 0
    %958 = vmatprep.subr.bf16.mxu0 0
    %959 = vmatpush2.bf16.msra.mxu0 0
    %960 = vmatprep.subr.bf16.mxu0 0
    %961 = vmatpush2.bf16.msra.mxu0 0
    %962 = vmatprep.subr.bf16.mxu0 0
    %963 = vmatpush2.bf16.msra.mxu0 0
    %964 = vmatprep.subr.bf16.mxu0 0
    %965 = vmatpush2.bf16.msra.mxu0 0
    %966 = vmatprep.subr.bf16.mxu0 0
    %967 = vmatpush2.bf16.msra.mxu0 0
    %968 = vmatprep.mubr.bf16.mxu0 0
    %969 = vmatmul.mubr.bf16.gmra.mxu0 %v879
    %v970 = vpop.f32.mrf.mxu0
    %v971 = vadd.f32 %v886, %v970
    %v972 = vpop.f32.mrf.mxu0
    %v973 = vpop.f32.mrf.mxu0
    %v974 = vpop.f32.mrf.mxu0
    %975 = vdwg.mxu0
    %v976 = vmax.f32 %v971, 0.0
    %s977 = scalar_lea.vmem [#allocation2], 512
    %v978 = vld [vmem:[%s977] sm:$0xf]
    %v979 = vld [vmem:[%s977 + $0x4] sm:$0xf]
    %v980 = vld [vmem:[%s977 + $0x8] sm:$0xf]
    %v981 = vld [vmem:[%s977 + $0xc] sm:$0xf]
    %v982 = vld [vmem:[%s977 + $0x10] sm:$0xf]
    %v983 = vld [vmem:[%s977 + $0x14] sm:$0xf]
    %v984 = vld [vmem:[%s977 + $0x18] sm:$0xf]
    %v985 = vld [vmem:[%s977 + $0x1c] sm:$0xf]
    %v986 = vld [vmem:[%s977 + $0x20] sm:$0xf]
    %v987 = vld [vmem:[%s977 + $0x24] sm:$0xf]
    %v988 = vld [vmem:[%s977 + $0x28] sm:$0xf]
    %v989 = vld [vmem:[%s977 + $0x2c] sm:$0xf]
    %v990 = vld [vmem:[%s977 + $0x30] sm:$0xf]
    %v991 = vld [vmem:[%s977 + $0x34] sm:$0xf]
    %v992 = vld [vmem:[%s977 + $0x38] sm:$0xf]
    %v993 = vld [vmem:[%s977 + $0x3c] sm:$0xf]
    %v994 = vpack.c.bf16 %v976, %v976
    %s995 = scalar_lea.vmem [#allocation5], 8
    %v996 = vld [vmem:[%s995] sm:$0x1]
    %v998 = vlaneseq
    %v999 = vshrl.u32 %v998, 7
    %v1000 = vsub.s32 0, %v999
    %v1001 = vrot.slane %v996, %v1000
    %v1019 = vunpack.c.l.b16 %v978
    %v1020 = vunpack.c.l.b16 %v979
    %v1021 = vunpack.c.l.b16 %v980
    %v1022 = vunpack.c.l.b16 %v981
    %v1023 = vunpack.c.l.b16 %v982
    %v1024 = vunpack.c.l.b16 %v983
    %v1025 = vunpack.c.l.b16 %v984
    %v1026 = vunpack.c.l.b16 %v985
    %v1027 = vunpack.c.l.b16 %v986
    %v1028 = vunpack.c.l.b16 %v987
    %v1029 = vunpack.c.l.b16 %v988
    %v1030 = vunpack.c.l.b16 %v989
    %v1031 = vunpack.c.l.b16 %v990
    %v1032 = vunpack.c.l.b16 %v991
    %v1033 = vunpack.c.l.b16 %v992
    %v1034 = vunpack.c.l.b16 %v993
    %v1035 = vpack.c.b16 %v1020, %v1019
    %v1036 = vpack.c.b16 %v1022, %v1021
    %v1037 = vpack.c.b16 %v1024, %v1023
    %v1038 = vpack.c.b16 %v1026, %v1025
    %v1039 = vpack.c.b16 %v1028, %v1027
    %v1040 = vpack.c.b16 %v1030, %v1029
    %v1041 = vpack.c.b16 %v1032, %v1031
    %v1042 = vpack.c.b16 %v1034, %v1033
    %1051 = vmatprep.subr.bf16.mxu0 0
    %1052 = vmatpush1.bf16.msra.mxu0 %v1042
    %1053 = vmatprep.subr.bf16.mxu0 0
    %1054 = vmatpush1.bf16.msra.mxu0 %v1041
    %1055 = vmatprep.subr.bf16.mxu0 0
    %1056 = vmatpush1.bf16.msra.mxu0 %v1040
    %1057 = vmatprep.subr.bf16.mxu0 0
    %1058 = vmatpush1.bf16.msra.mxu0 %v1039
    %1059 = vmatprep.subr.bf16.mxu0 0
    %1060 = vmatpush1.bf16.msra.mxu0 %v1038
    %1061 = vmatprep.subr.bf16.mxu0 0
    %1062 = vmatpush1.bf16.msra.mxu0 %v1037
    %1063 = vmatprep.subr.bf16.mxu0 0
    %1064 = vmatpush1.bf16.msra.mxu0 %v1036
    %1065 = vmatprep.subr.bf16.mxu0 0
    %1066 = vmatpush1.bf16.msra.mxu0 %v1035
    %1067 = vmatprep.subr.bf16.mxu0 0
    %1068 = vmatpush2.bf16.msra.mxu0 0
    %1069 = vmatprep.subr.bf16.mxu0 0
    %1070 = vmatpush2.bf16.msra.mxu0 0
    %1071 = vmatprep.subr.bf16.mxu0 0
    %1072 = vmatpush2.bf16.msra.mxu0 0
    %1073 = vmatprep.subr.bf16.mxu0 0
    %1074 = vmatpush2.bf16.msra.mxu0 0
    %1075 = vmatprep.subr.bf16.mxu0 0
    %1076 = vmatpush2.bf16.msra.mxu0 0
    %1077 = vmatprep.subr.bf16.mxu0 0
    %1078 = vmatpush2.bf16.msra.mxu0 0
    %1079 = vmatprep.subr.bf16.mxu0 0
    %1080 = vmatpush2.bf16.msra.mxu0 0
    %1081 = vmatprep.subr.bf16.mxu0 0
    %1082 = vmatpush2.bf16.msra.mxu0 0
    %1083 = vmatprep.mubr.bf16.mxu0 0
    %1084 = vmatmul.mubr.bf16.gmra.mxu0 %v994
    %v1085 = vpop.f32.mrf.mxu0
    %v1086 = vadd.f32 %v1001, %v1085
    %v1087 = vpop.f32.mrf.mxu0
    %v1088 = vpop.f32.mrf.mxu0
    %v1089 = vpop.f32.mrf.mxu0
    %1090 = vdwg.mxu0
    %v1091 = vmax.f32 %v1086, 0.0
    %s1092 = scalar_lea.vmem [#allocation2], 576
    %v1093 = vld [vmem:[%s1092] sm:$0xf]
    %v1094 = vld [vmem:[%s1092 + $0x4] sm:$0xf]
    %v1095 = vld [vmem:[%s1092 + $0x8] sm:$0xf]
    %v1096 = vld [vmem:[%s1092 + $0xc] sm:$0xf]
    %v1097 = vld [vmem:[%s1092 + $0x10] sm:$0xf]
    %v1098 = vld [vmem:[%s1092 + $0x14] sm:$0xf]
    %v1099 = vld [vmem:[%s1092 + $0x18] sm:$0xf]
    %v1100 = vld [vmem:[%s1092 + $0x1c] sm:$0xf]
    %v1101 = vld [vmem:[%s1092 + $0x20] sm:$0xf]
    %v1102 = vld [vmem:[%s1092 + $0x24] sm:$0xf]
    %v1103 = vld [vmem:[%s1092 + $0x28] sm:$0xf]
    %v1104 = vld [vmem:[%s1092 + $0x2c] sm:$0xf]
    %v1105 = vld [vmem:[%s1092 + $0x30] sm:$0xf]
    %v1106 = vld [vmem:[%s1092 + $0x34] sm:$0xf]
    %v1107 = vld [vmem:[%s1092 + $0x38] sm:$0xf]
    %v1108 = vld [vmem:[%s1092 + $0x3c] sm:$0xf]
    %v1109 = vpack.c.bf16 %v1091, %v1091
    %s1110 = scalar_lea.vmem [#allocation5], 9
    %v1111 = vld [vmem:[%s1110] sm:$0x1]
    %v1113 = vlaneseq
    %v1114 = vshrl.u32 %v1113, 7
    %v1115 = vsub.s32 0, %v1114
    %v1116 = vrot.slane %v1111, %v1115
    %v1134 = vunpack.c.l.b16 %v1093
    %v1135 = vunpack.c.l.b16 %v1094
    %v1136 = vunpack.c.l.b16 %v1095
    %v1137 = vunpack.c.l.b16 %v1096
    %v1138 = vunpack.c.l.b16 %v1097
    %v1139 = vunpack.c.l.b16 %v1098
    %v1140 = vunpack.c.l.b16 %v1099
    %v1141 = vunpack.c.l.b16 %v1100
    %v1142 = vunpack.c.l.b16 %v1101
    %v1143 = vunpack.c.l.b16 %v1102
    %v1144 = vunpack.c.l.b16 %v1103
    %v1145 = vunpack.c.l.b16 %v1104
    %v1146 = vunpack.c.l.b16 %v1105
    %v1147 = vunpack.c.l.b16 %v1106
    %v1148 = vunpack.c.l.b16 %v1107
    %v1149 = vunpack.c.l.b16 %v1108
    %v1150 = vpack.c.b16 %v1135, %v1134
    %v1151 = vpack.c.b16 %v1137, %v1136
    %v1152 = vpack.c.b16 %v1139, %v1138
    %v1153 = vpack.c.b16 %v1141, %v1140
    %v1154 = vpack.c.b16 %v1143, %v1142
    %v1155 = vpack.c.b16 %v1145, %v1144
    %v1156 = vpack.c.b16 %v1147, %v1146
    %v1157 = vpack.c.b16 %v1149, %v1148
    %1166 = vmatprep.subr.bf16.mxu0 0
    %1167 = vmatpush1.bf16.msra.mxu0 %v1157
    %1168 = vmatprep.subr.bf16.mxu0 0
    %1169 = vmatpush1.bf16.msra.mxu0 %v1156
    %1170 = vmatprep.subr.bf16.mxu0 0
    %1171 = vmatpush1.bf16.msra.mxu0 %v1155
    %1172 = vmatprep.subr.bf16.mxu0 0
    %1173 = vmatpush1.bf16.msra.mxu0 %v1154
    %1174 = vmatprep.subr.bf16.mxu0 0
    %1175 = vmatpush1.bf16.msra.mxu0 %v1153
    %1176 = vmatprep.subr.bf16.mxu0 0
    %1177 = vmatpush1.bf16.msra.mxu0 %v1152
    %1178 = vmatprep.subr.bf16.mxu0 0
    %1179 = vmatpush1.bf16.msra.mxu0 %v1151
    %1180 = vmatprep.subr.bf16.mxu0 0
    %1181 = vmatpush1.bf16.msra.mxu0 %v1150
    %1182 = vmatprep.subr.bf16.mxu0 0
    %1183 = vmatpush2.bf16.msra.mxu0 0
    %1184 = vmatprep.subr.bf16.mxu0 0
    %1185 = vmatpush2.bf16.msra.mxu0 0
    %1186 = vmatprep.subr.bf16.mxu0 0
    %1187 = vmatpush2.bf16.msra.mxu0 0
    %1188 = vmatprep.subr.bf16.mxu0 0
    %1189 = vmatpush2.bf16.msra.mxu0 0
    %1190 = vmatprep.subr.bf16.mxu0 0
    %1191 = vmatpush2.bf16.msra.mxu0 0
    %1192 = vmatprep.subr.bf16.mxu0 0
    %1193 = vmatpush2.bf16.msra.mxu0 0
    %1194 = vmatprep.subr.bf16.mxu0 0
    %1195 = vmatpush2.bf16.msra.mxu0 0
    %1196 = vmatprep.subr.bf16.mxu0 0
    %1197 = vmatpush2.bf16.msra.mxu0 0
    %1198 = vmatprep.mubr.bf16.mxu0 0
    %1199 = vmatmul.mubr.bf16.gmra.mxu0 %v1109
    %v1200 = vpop.f32.mrf.mxu0
    %v1201 = vadd.f32 %v1116, %v1200
    %v1202 = vpop.f32.mrf.mxu0
    %v1203 = vpop.f32.mrf.mxu0
    %v1204 = vpop.f32.mrf.mxu0
    %1205 = vdwg.mxu0
    %v1206 = vadd.f32 %v1201, %v861
    %v1207 = vmax.f32 %v1206, 0.0
    %s1208 = scalar_lea.vmem [#allocation2], 640
    %v1209 = vld [vmem:[%s1208] sm:$0xf]
    %v1210 = vld [vmem:[%s1208 + $0x4] sm:$0xf]
    %v1211 = vld [vmem:[%s1208 + $0x8] sm:$0xf]
    %v1212 = vld [vmem:[%s1208 + $0xc] sm:$0xf]
    %v1213 = vld [vmem:[%s1208 + $0x10] sm:$0xf]
    %v1214 = vld [vmem:[%s1208 + $0x14] sm:$0xf]
    %v1215 = vld [vmem:[%s1208 + $0x18] sm:$0xf]
    %v1216 = vld [vmem:[%s1208 + $0x1c] sm:$0xf]
    %v1217 = vld [vmem:[%s1208 + $0x20] sm:$0xf]
    %v1218 = vld [vmem:[%s1208 + $0x24] sm:$0xf]
    %v1219 = vld [vmem:[%s1208 + $0x28] sm:$0xf]
    %v1220 = vld [vmem:[%s1208 + $0x2c] sm:$0xf]
    %v1221 = vld [vmem:[%s1208 + $0x30] sm:$0xf]
    %v1222 = vld [vmem:[%s1208 + $0x34] sm:$0xf]
    %v1223 = vld [vmem:[%s1208 + $0x38] sm:$0xf]
    %v1224 = vld [vmem:[%s1208 + $0x3c] sm:$0xf]
    %v1225 = vpack.c.bf16 %v1207, %v1207
    %s1226 = scalar_lea.vmem [#allocation5], 10
    %v1227 = vld [vmem:[%s1226] sm:$0x1]
    %v1229 = vlaneseq
    %v1230 = vshrl.u32 %v1229, 7
    %v1231 = vsub.s32 0, %v1230
    %v1232 = vrot.slane %v1227, %v1231
    %v1250 = vunpack.c.l.b16 %v1209
    %v1251 = vunpack.c.l.b16 %v1210
    %v1252 = vunpack.c.l.b16 %v1211
    %v1253 = vunpack.c.l.b16 %v1212
    %v1254 = vunpack.c.l.b16 %v1213
    %v1255 = vunpack.c.l.b16 %v1214
    %v1256 = vunpack.c.l.b16 %v1215
    %v1257 = vunpack.c.l.b16 %v1216
    %v1258 = vunpack.c.l.b16 %v1217
    %v1259 = vunpack.c.l.b16 %v1218
    %v1260 = vunpack.c.l.b16 %v1219
    %v1261 = vunpack.c.l.b16 %v1220
    %v1262 = vunpack.c.l.b16 %v1221
    %v1263 = vunpack.c.l.b16 %v1222
    %v1264 = vunpack.c.l.b16 %v1223
    %v1265 = vunpack.c.l.b16 %v1224
    %v1266 = vpack.c.b16 %v1251, %v1250
    %v1267 = vpack.c.b16 %v1253, %v1252
    %v1268 = vpack.c.b16 %v1255, %v1254
    %v1269 = vpack.c.b16 %v1257, %v1256
    %v1270 = vpack.c.b16 %v1259, %v1258
    %v1271 = vpack.c.b16 %v1261, %v1260
    %v1272 = vpack.c.b16 %v1263, %v1262
    %v1273 = vpack.c.b16 %v1265, %v1264
    %1282 = vmatprep.subr.bf16.mxu0 0
    %1283 = vmatpush1.bf16.msra.mxu0 %v1273
    %1284 = vmatprep.subr.bf16.mxu0 0
    %1285 = vmatpush1.bf16.msra.mxu0 %v1272
    %1286 = vmatprep.subr.bf16.mxu0 0
    %1287 = vmatpush1.bf16.msra.mxu0 %v1271
    %1288 = vmatprep.subr.bf16.mxu0 0
    %1289 = vmatpush1.bf16.msra.mxu0 %v1270
    %1290 = vmatprep.subr.bf16.mxu0 0
    %1291 = vmatpush1.bf16.msra.mxu0 %v1269
    %1292 = vmatprep.subr.bf16.mxu0 0
    %1293 = vmatpush1.bf16.msra.mxu0 %v1268
    %1294 = vmatprep.subr.bf16.mxu0 0
    %1295 = vmatpush1.bf16.msra.mxu0 %v1267
    %1296 = vmatprep.subr.bf16.mxu0 0
    %1297 = vmatpush1.bf16.msra.mxu0 %v1266
    %1298 = vmatprep.subr.bf16.mxu0 0
    %1299 = vmatpush2.bf16.msra.mxu0 0
    %1300 = vmatprep.subr.bf16.mxu0 0
    %1301 = vmatpush2.bf16.msra.mxu0 0
    %1302 = vmatprep.subr.bf16.mxu0 0
    %1303 = vmatpush2.bf16.msra.mxu0 0
    %1304 = vmatprep.subr.bf16.mxu0 0
    %1305 = vmatpush2.bf16.msra.mxu0 0
    %1306 = vmatprep.subr.bf16.mxu0 0
    %1307 = vmatpush2.bf16.msra.mxu0 0
    %1308 = vmatprep.subr.bf16.mxu0 0
    %1309 = vmatpush2.bf16.msra.mxu0 0
    %1310 = vmatprep.subr.bf16.mxu0 0
    %1311 = vmatpush2.bf16.msra.mxu0 0
    %1312 = vmatprep.subr.bf16.mxu0 0
    %1313 = vmatpush2.bf16.msra.mxu0 0
    %1314 = vmatprep.mubr.bf16.mxu0 0
    %1315 = vmatmul.mubr.bf16.gmra.mxu0 %v1225
    %v1316 = vpop.f32.mrf.mxu0
    %v1317 = vadd.f32 %v1232, %v1316
    %v1318 = vpop.f32.mrf.mxu0
    %v1319 = vpop.f32.mrf.mxu0
    %v1320 = vpop.f32.mrf.mxu0
    %1321 = vdwg.mxu0
    %v1322 = vmax.f32 %v1317, 0.0
    %s1323 = scalar_lea.vmem [#allocation2], 704
    %v1324 = vld [vmem:[%s1323] sm:$0xf]
    %v1325 = vld [vmem:[%s1323 + $0x4] sm:$0xf]
    %v1326 = vld [vmem:[%s1323 + $0x8] sm:$0xf]
    %v1327 = vld [vmem:[%s1323 + $0xc] sm:$0xf]
    %v1328 = vld [vmem:[%s1323 + $0x10] sm:$0xf]
    %v1329 = vld [vmem:[%s1323 + $0x14] sm:$0xf]
    %v1330 = vld [vmem:[%s1323 + $0x18] sm:$0xf]
    %v1331 = vld [vmem:[%s1323 + $0x1c] sm:$0xf]
    %v1332 = vld [vmem:[%s1323 + $0x20] sm:$0xf]
    %v1333 = vld [vmem:[%s1323 + $0x24] sm:$0xf]
    %v1334 = vld [vmem:[%s1323 + $0x28] sm:$0xf]
    %v1335 = vld [vmem:[%s1323 + $0x2c] sm:$0xf]
    %v1336 = vld [vmem:[%s1323 + $0x30] sm:$0xf]
    %v1337 = vld [vmem:[%s1323 + $0x34] sm:$0xf]
    %v1338 = vld [vmem:[%s1323 + $0x38] sm:$0xf]
    %v1339 = vld [vmem:[%s1323 + $0x3c] sm:$0xf]
    %v1340 = vpack.c.bf16 %v1322, %v1322
    %s1341 = scalar_lea.vmem [#allocation5], 11
    %v1342 = vld [vmem:[%s1341] sm:$0x1]
    %v1344 = vlaneseq
    %v1345 = vshrl.u32 %v1344, 7
    %v1346 = vsub.s32 0, %v1345
    %v1347 = vrot.slane %v1342, %v1346
    %v1365 = vunpack.c.l.b16 %v1324
    %v1366 = vunpack.c.l.b16 %v1325
    %v1367 = vunpack.c.l.b16 %v1326
    %v1368 = vunpack.c.l.b16 %v1327
    %v1369 = vunpack.c.l.b16 %v1328
    %v1370 = vunpack.c.l.b16 %v1329
    %v1371 = vunpack.c.l.b16 %v1330
    %v1372 = vunpack.c.l.b16 %v1331
    %v1373 = vunpack.c.l.b16 %v1332
    %v1374 = vunpack.c.l.b16 %v1333
    %v1375 = vunpack.c.l.b16 %v1334
    %v1376 = vunpack.c.l.b16 %v1335
    %v1377 = vunpack.c.l.b16 %v1336
    %v1378 = vunpack.c.l.b16 %v1337
    %v1379 = vunpack.c.l.b16 %v1338
    %v1380 = vunpack.c.l.b16 %v1339
    %v1381 = vpack.c.b16 %v1366, %v1365
    %v1382 = vpack.c.b16 %v1368, %v1367
    %v1383 = vpack.c.b16 %v1370, %v1369
    %v1384 = vpack.c.b16 %v1372, %v1371
    %v1385 = vpack.c.b16 %v1374, %v1373
    %v1386 = vpack.c.b16 %v1376, %v1375
    %v1387 = vpack.c.b16 %v1378, %v1377
    %v1388 = vpack.c.b16 %v1380, %v1379
    %1397 = vmatprep.subr.bf16.mxu0 0
    %1398 = vmatpush1.bf16.msra.mxu0 %v1388
    %1399 = vmatprep.subr.bf16.mxu0 0
    %1400 = vmatpush1.bf16.msra.mxu0 %v1387
    %1401 = vmatprep.subr.bf16.mxu0 0
    %1402 = vmatpush1.bf16.msra.mxu0 %v1386
    %1403 = vmatprep.subr.bf16.mxu0 0
    %1404 = vmatpush1.bf16.msra.mxu0 %v1385
    %1405 = vmatprep.subr.bf16.mxu0 0
    %1406 = vmatpush1.bf16.msra.mxu0 %v1384
    %1407 = vmatprep.subr.bf16.mxu0 0
    %1408 = vmatpush1.bf16.msra.mxu0 %v1383
    %1409 = vmatprep.subr.bf16.mxu0 0
    %1410 = vmatpush1.bf16.msra.mxu0 %v1382
    %1411 = vmatprep.subr.bf16.mxu0 0
    %1412 = vmatpush1.bf16.msra.mxu0 %v1381
    %1413 = vmatprep.subr.bf16.mxu0 0
    %1414 = vmatpush2.bf16.msra.mxu0 0
    %1415 = vmatprep.subr.bf16.mxu0 0
    %1416 = vmatpush2.bf16.msra.mxu0 0
    %1417 = vmatprep.subr.bf16.mxu0 0
    %1418 = vmatpush2.bf16.msra.mxu0 0
    %1419 = vmatprep.subr.bf16.mxu0 0
    %1420 = vmatpush2.bf16.msra.mxu0 0
    %1421 = vmatprep.subr.bf16.mxu0 0
    %1422 = vmatpush2.bf16.msra.mxu0 0
    %1423 = vmatprep.subr.bf16.mxu0 0
    %1424 = vmatpush2.bf16.msra.mxu0 0
    %1425 = vmatprep.subr.bf16.mxu0 0
    %1426 = vmatpush2.bf16.msra.mxu0 0
    %1427 = vmatprep.subr.bf16.mxu0 0
    %1428 = vmatpush2.bf16.msra.mxu0 0
    %1429 = vmatprep.mubr.bf16.mxu0 0
    %1430 = vmatmul.mubr.bf16.gmra.mxu0 %v1340
    %v1431 = vpop.f32.mrf.mxu0
    %v1432 = vadd.f32 %v1347, %v1431
    %v1433 = vpop.f32.mrf.mxu0
    %v1434 = vpop.f32.mrf.mxu0
    %v1435 = vpop.f32.mrf.mxu0
    %1436 = vdwg.mxu0
    %v1437 = vxor.u32 %v1432, 2147483648
    %v1438 = vmul.f32 %v1437, 1.442695
    %v1439 = vpow.pop %v1438
    %v1440 = vadd.f32 %v1439, 1.0
    %v1441 = vrcp.pop %v1440
    %v1442 = vmul.f32 1.0, %v1441
    %1443 = vst [vmem:[#allocation8] sm:$0xff] %v1442
    // Predicated region
    $region26: #{tpu_custom_call.1} parent=1 // pred_check
      _
    $region27: #{tpu_custom_call.1} parent=1 // pred_check_branch
      %1445 = sbr.rel (0) target = $region29
    $region28: #{tpu_custom_call.1} parent=1 // pred_region
      %s1447 = ssub.s32 128, 128
      %1448 = vsyncadd [#allocation4], %s1447
      %s1450 = sshll.u32 [#allocation8], 4
      %s1451 = int_to_ptr.vmem [resolvable:$true] %s1450
      %1453 = dma.vmem_to_hbm [thread:$0]  %s1451, 128, %s3, [#allocation4]
    $region29: #{tpu_custom_call.1} parent=1 // pred_fallthru
      _
    // Predicated region
    $region30: #{tpu_custom_call.1} parent=1 // pred_check
      _
    $region31: #{tpu_custom_call.1} parent=1 // pred_check_branch
      %1455 = sbr.rel (0) target = $region33
    $region32: #{tpu_custom_call.1} parent=1 // pred_region
      %1456 = dma.done [#allocation4], 128
    $region33: #{tpu_custom_call.1} parent=1 // pred_fallthru
      _
    %1457 = vsyncpa [#allocation3], 1
    %1458 = vsyncpa [#allocation6], 1
    %1459 = vsyncpa [#allocation4], 1

</llo_original>
